<compile_context>
chip_gen: v6e
topology: v6e:2x2x1
jax: 0.10.0
libtpu: 0.0.40
codegen_flags: <defaults>
</compile_context>

<pallas_src>
import math

import jax
import jax.numpy as jnp
from jax.experimental import pallas as pl
from jax.experimental.pallas import tpu as pltpu

# ----------------------------- config ---------------------------------------
VOCAB = 64
MAX_POS = 16
BATCH = 2
SEQ = 8
HIDDEN = 32
N_HEADS = 2
HEAD_DIM = HIDDEN // N_HEADS
INTERMEDIATE = 64
N_LAYERS = 2
FFN_HIDDEN = HIDDEN // 2
LN_EPS = 1e-12

VEC_W = 3 * HIDDEN                   # lane width of the packed small-param slab
N_VEC_ROWS = 2 + 8 * N_LAYERS + 2    # emb-LN(2) + 8 rows/layer + head biases(2)
OUT_LANES = 128                      # lane-padded packed output slab width


# ----------------------------- fused kernel ----------------------------------
def _model_kernel(x_ref, mask_ref, vecs_ref, wqkv_ref, wo_ref, w1_ref, w2_ref,
                  whead_ref, out_ref):
    """One grid program = one batch sample ('parallel' grid axis)."""
    f32, bf16 = jnp.float32, jnp.bfloat16
    seq = x_ref.shape[0]

    vecs = vecs_ref[...]                                   # (N_VEC_ROWS, 96) f32

    def vec(row, width):                                   # (1, width) slice
        return vecs[row:row + 1, :width]

    def ln(y, g, b):                                       # f32 LayerNorm
        mu = jnp.mean(y, axis=-1, keepdims=True)
        var = jnp.mean((y - mu) ** 2, axis=-1, keepdims=True)
        return (y - mu) * jax.lax.rsqrt(var + LN_EPS) * g + b

    def mm(a, w):                                          # bf16 MXU, f32 acc
        return jnp.dot(a.astype(bf16), w, preferred_element_type=f32)

    # --- embedding LayerNorm -------------------------------------------------
    x = ln(x_ref[...], vec(0, HIDDEN), vec(1, HIDDEN))     # (S, H)

    # --- additive key-padding bias, built on the VPU -------------------------
    bias = (1.0 - mask_ref[...]) * (-1e9)                  # (1, S)

    # Lane masks selecting each head's HEAD_DIM lanes (built once, reused).
    lane = jax.lax.broadcasted_iota(jnp.int32, (1, HIDDEN), 1)
    head_masks = [
        ((lane >= h * HEAD_DIM) & (lane < (h + 1) * HEAD_DIM)).astype(f32)
        for h in range(N_HEADS)]

    # --- encoder layers (statically unrolled over the 2 layers) --------------
    for l in range(N_LAYERS):
        base = 2 + 8 * l
        qkv = mm(x, wqkv_ref[l]) + vec(base + 0, 3 * HIDDEN)       # (S, 3H)
        q = qkv[:, :HIDDEN]                    # 1/sqrt(hd) folded into Wq/bq
        k = qkv[:, HIDDEN:2 * HIDDEN]
        v = qkv[:, 2 * HIDDEN:]

        # Per-head attention via lane-masked full-width contractions; each
        # head's context accumulates straight into its own lanes -> no
        # per-head slicing relayouts and no concatenates.
        ctx = jnp.zeros((seq, HIDDEN), f32)
        for hm in head_masks:
            s = jnp.einsum("qd,kd->qk", (q * hm).astype(bf16), k.astype(bf16),
                           preferred_element_type=f32) + bias      # (S, S)
            s = s - jnp.max(s, axis=-1, keepdims=True)
            p = jnp.exp(s)
            p = p * pl.reciprocal(jnp.sum(p, axis=-1, keepdims=True),
                                  approx=True)
            ctx = ctx + jnp.dot(p.astype(bf16), (v * hm).astype(bf16),
                                preferred_element_type=f32)

        attn = mm(ctx, wo_ref[l]) + vec(base + 1, HIDDEN)
        x = ln(attn + x, vec(base + 2, HIDDEN), vec(base + 3, HIDDEN))

        h1 = jax.nn.gelu(mm(x, w1_ref[l]) + vec(base + 4, INTERMEDIATE))
        h2 = mm(h1, w2_ref[l]) + vec(base + 5, HIDDEN)
        x = ln(h2 + x, vec(base + 6, HIDDEN), vec(base + 7, HIDDEN))

    # --- mean pooling over sequence: one MXU dot against a constant 1/S row --
    pool = jnp.full((1, seq), 1.0 / seq, f32)
    emb = jnp.dot(pool, x, preferred_element_type=f32)             # (1, H)

    # --- FFN regression head: Linear(H, H/2) -> ReLU -> Linear(H/2, 1) -------
    whead = whead_ref[...]                                         # (H+1, H/2)
    hid = jnp.maximum(
        mm(emb, whead[:HIDDEN]) + vec(2 + 8 * N_LAYERS, FFN_HIDDEN), 0.0)
    pred = (jnp.sum(hid * whead[HIDDEN:HIDDEN + 1].astype(f32),
                    axis=-1, keepdims=True)
            + vec(2 + 8 * N_LAYERS + 1, 1))                        # (1, 1)

    # Single lane-padded output slab: [embedding (H) | score (1) | zero pad].
    pad = jnp.zeros((1, OUT_LANES - HIDDEN - 1), f32)
    out_ref[...] = jnp.concatenate([emb, pred, pad], axis=-1)      # (1, 128)


# ----------------------------- parameters ------------------------------------
def init_params(key):
    def nrm(k, shape, scale=0.02):
        return scale * jax.random.normal(k, shape, dtype=jnp.float32)

    keys = iter(jax.random.split(key, 8 + 4 * N_LAYERS))
    bf16 = jnp.bfloat16
    attn_scale = 1.0 / math.sqrt(HEAD_DIM)

    tok_emb = nrm(next(keys), (VOCAB, HIDDEN))
    pos_emb = nrm(next(keys), (MAX_POS, HIDDEN))

    def pad_row(v):
        v = jnp.asarray(v, jnp.float32).reshape(-1)
        return jnp.pad(v, (0, VEC_W - v.shape[0]))

    # Packed small-parameter slab: one row per tiny vector, zero-padded to 96.
    rows = [pad_row(jnp.ones(HIDDEN)),      # emb LN gamma
            pad_row(jnp.zeros(HIDDEN))]     # emb LN beta

    wqkv, wo, w1, w2 = [], [], [], []
    for _ in range(N_LAYERS):
        wqkv_l = nrm(next(keys), (HIDDEN, 3 * HIDDEN))
        # Fold the 1/sqrt(head_dim) softmax scale into Wq / bq at init time.
        wqkv_l = wqkv_l.at[:, :HIDDEN].multiply(attn_scale)
        bqkv_l = jnp.zeros(3 * HIDDEN, jnp.float32).at[:HIDDEN].multiply(attn_scale)
        wqkv.append(wqkv_l.astype(bf16))
        wo.append(nrm(next(keys), (HIDDEN, HIDDEN)).astype(bf16))
        w1.append(nrm(next(keys), (HIDDEN, INTERMEDIATE)).astype(bf16))
        w2.append(nrm(next(keys), (INTERMEDIATE, HIDDEN)).astype(bf16))
        rows += [pad_row(bqkv_l),                    # qkv bias
                 pad_row(jnp.zeros(HIDDEN)),         # attn-out bias
                 pad_row(jnp.ones(HIDDEN)),          # ln1 gamma
                 pad_row(jnp.zeros(HIDDEN)),         # ln1 beta
                 pad_row(jnp.zeros(INTERMEDIATE)),   # mlp bias 1
                 pad_row(jnp.zeros(HIDDEN)),         # mlp bias 2
                 pad_row(jnp.ones(HIDDEN)),          # ln2 gamma
                 pad_row(jnp.zeros(HIDDEN))]         # ln2 beta

    head_w1 = nrm(next(keys), (HIDDEN, FFN_HIDDEN)).astype(bf16)
    head_w2 = nrm(next(keys), (FFN_HIDDEN, 1)).astype(bf16)
    rows += [pad_row(jnp.zeros(FFN_HIDDEN)),         # head bias 1
             pad_row(jnp.zeros(1))]                  # head bias 2

    return {
        "tok_emb": tok_emb,
        "pos_emb": pos_emb,
        "vecs": jnp.stack(rows),                                   # (20, 96)
        "wqkv": jnp.stack(wqkv),                                   # (L, H, 3H)
        "wo": jnp.stack(wo),                                       # (L, H, H)
        "w1": jnp.stack(w1),                                       # (L, H, I)
        "w2": jnp.stack(w2),                                       # (L, I, H)
        "whead": jnp.concatenate([head_w1, head_w2.T], axis=0),    # (H+1, H/2)
    }


# ----------------------------- forward ---------------------------------------
def combined_model_forward(params, input_ids, attention_mask):
    """Mirrors CombinedModel.forward: encoder -> mean over seq -> FFN head.

    Returns (output (B, 1), embedding (B, H))."""
    b, s = input_ids.shape

    # Embedding gather stays in XLA glue (see TODO at top); everything else
    # runs inside one pallas_call.
    tok = jnp.take(params["tok_emb"], input_ids, axis=0)           # (B, S, H)
    pos = params["pos_emb"][:s][None, :, :]                        # (1, S, H)
    x = (tok + pos).astype(jnp.float32)                            # (B, S, H)
    mask = attention_mask.astype(jnp.float32).reshape(b, 1, s)     # (B, 1, S)

    const3 = lambda i: (0, 0, 0)
    const2 = lambda i: (0, 0)
    res = pl.pallas_call(
        _model_kernel,
        grid=(b,),
        in_specs=[
            pl.BlockSpec((None, s, HIDDEN), lambda i: (i, 0, 0)),          # x
            pl.BlockSpec((None, 1, s), lambda i: (i, 0, 0)),               # mask
            pl.BlockSpec((N_VEC_ROWS, VEC_W), const2),                     # packed LN/bias slab
            pl.BlockSpec((N_LAYERS, HIDDEN, 3 * HIDDEN), const3),          # wqkv
            pl.BlockSpec((N_LAYERS, HIDDEN, HIDDEN), const3),              # wo
            pl.BlockSpec((N_LAYERS, HIDDEN, INTERMEDIATE), const3),        # w1
            pl.BlockSpec((N_LAYERS, INTERMEDIATE, HIDDEN), const3),        # w2
            pl.BlockSpec((HIDDEN + 1, FFN_HIDDEN), const2),                # head weights
        ],
        out_specs=pl.BlockSpec((None, 1, OUT_LANES), lambda i: (i, 0, 0)),
        out_shape=jax.ShapeDtypeStruct((b, 1, OUT_LANES), jnp.float32),
        compiler_params=pltpu.CompilerParams(
            dimension_semantics=("parallel",)),
    )(x, mask, params["vecs"], params["wqkv"], params["wo"],
      params["w1"], params["w2"], params["whead"])

    embedding = res[:, 0, :HIDDEN]                                 # (B, H)
    output = res[:, 0, HIDDEN:HIDDEN + 1]                          # (B, 1)
    return output, embedding


# ----------------------------- main -------------------------------------------
if __name__ == "__main__":
    root = jax.random.PRNGKey(0)
    k_param, k_ids = jax.random.split(root)

    params = init_params(k_param)
    input_ids = jax.random.randint(k_ids, (BATCH, SEQ), 0, VOCAB, dtype=jnp.int32)
    attention_mask = jnp.ones((BATCH, SEQ), jnp.int32)
    attention_mask = attention_mask.at[1, -2:].set(0)   # pad tail of sample 1

    output, embedding = combined_model_forward(params, input_ids, attention_mask)
    jax.block_until_ready((output, embedding))

    assert output.shape == (BATCH, 1)
    assert embedding.shape == (BATCH, HIDDEN)
    assert bool(jnp.all(jnp.isfinite(output))) and bool(jnp.all(jnp.isfinite(embedding)))
    print("KERNEL_OK")
</pallas_src>

<mosaic_0001>
module attributes {stable_mosaic.version = 11 : i64} {
  func.func @_model_kernel(%arg0: i32, %arg1: memref<1x8x32xf32, #tpu.memory_space<vmem>>, %arg2: memref<1x1x8xf32, #tpu.memory_space<vmem>>, %arg3: memref<20x96xf32, #tpu.memory_space<vmem>>, %arg4: memref<2x32x96xbf16, #tpu.memory_space<vmem>>, %arg5: memref<2x32x32xbf16, #tpu.memory_space<vmem>>, %arg6: memref<2x32x64xbf16, #tpu.memory_space<vmem>>, %arg7: memref<2x64x32xbf16, #tpu.memory_space<vmem>>, %arg8: memref<33x16xbf16, #tpu.memory_space<vmem>>, %arg9: memref<1x1x128xf32, #tpu.memory_space<vmem>>) attributes {dimension_semantics = [#tpu.dimension_semantics<parallel>], iteration_bounds = array<i64: 2>, scalar_prefetch = 0 : i64, scratch_operands = 0 : i64, tpu.core_type = #tpu.core_type<tc>, window_params = [{transform_indices = @transform_0, window_bounds = array<i64: 1, 8, 32>}, {transform_indices = @transform_1, window_bounds = array<i64: 1, 1, 8>}, {pipeline_mode = #tpu.pipeline_mode<synchronous>, transform_indices = @transform_2, window_bounds = array<i64: 20, 96>}, {pipeline_mode = #tpu.pipeline_mode<synchronous>, transform_indices = @transform_3, window_bounds = array<i64: 2, 32, 96>}, {pipeline_mode = #tpu.pipeline_mode<synchronous>, transform_indices = @transform_4, window_bounds = array<i64: 2, 32, 32>}, {pipeline_mode = #tpu.pipeline_mode<synchronous>, transform_indices = @transform_5, window_bounds = array<i64: 2, 32, 64>}, {pipeline_mode = #tpu.pipeline_mode<synchronous>, transform_indices = @transform_6, window_bounds = array<i64: 2, 64, 32>}, {pipeline_mode = #tpu.pipeline_mode<synchronous>, transform_indices = @transform_7, window_bounds = array<i64: 33, 16>}, {transform_indices = @transform_8, window_bounds = array<i64: 1, 1, 128>}]} {
    %c0 = arith.constant 0 : index
    %c0_0 = arith.constant 0 : index
    %0 = vector.load %arg3[%c0, %c0_0] : memref<20x96xf32, #tpu.memory_space<vmem>>, vector<20x96xf32>
    %c0_1 = arith.constant 0 : index
    %c0_2 = arith.constant 0 : index
    %c0_3 = arith.constant 0 : index
    %1 = vector.load %arg1[%c0_1, %c0_2, %c0_3] : memref<1x8x32xf32, #tpu.memory_space<vmem>>, vector<1x8x32xf32>
    %2 = vector.shape_cast %1 : vector<1x8x32xf32> to vector<8x32xf32>
    %3 = vector.extract_strided_slice %0 {offsets = [0, 0], sizes = [1, 32], strides = [1, 1]} : vector<20x96xf32> to vector<1x32xf32>
    %4 = vector.extract_strided_slice %0 {offsets = [1, 0], sizes = [1, 32], strides = [1, 1]} : vector<20x96xf32> to vector<1x32xf32>
    %cst = arith.constant dense<0.000000e+00> : vector<8xf32>
    %5 = vector.multi_reduction <add>, %2, %cst [1] : vector<8x32xf32> to vector<8xf32>
    %6 = vector.shape_cast %5 : vector<8xf32> to vector<8x1xf32>
    %cst_4 = arith.constant 3.200000e+01 : f32
    %7 = vector.broadcast %cst_4 : f32 to vector<8x1xf32>
    %8 = arith.divf %6, %7 : vector<8x1xf32>
    %9 = vector.broadcast %8 : vector<8x1xf32> to vector<8x32xf32>
    %10 = arith.subf %2, %9 : vector<8x32xf32>
    %11 = arith.mulf %10, %10 : vector<8x32xf32>
    %cst_5 = arith.constant dense<0.000000e+00> : vector<8xf32>
    %12 = vector.multi_reduction <add>, %11, %cst_5 [1] : vector<8x32xf32> to vector<8xf32>
    %13 = vector.shape_cast %12 : vector<8xf32> to vector<8x1xf32>
    %cst_6 = arith.constant 3.200000e+01 : f32
    %14 = vector.broadcast %cst_6 : f32 to vector<8x1xf32>
    %15 = arith.divf %13, %14 : vector<8x1xf32>
    %16 = vector.broadcast %8 : vector<8x1xf32> to vector<8x32xf32>
    %17 = arith.subf %2, %16 : vector<8x32xf32>
    %cst_7 = arith.constant 9.99999996E-13 : f32
    %18 = vector.broadcast %cst_7 : f32 to vector<8x1xf32>
    %19 = arith.addf %15, %18 : vector<8x1xf32>
    %20 = math.rsqrt %19 : vector<8x1xf32>
    %21 = vector.broadcast %20 : vector<8x1xf32> to vector<8x32xf32>
    %22 = arith.mulf %17, %21 : vector<8x32xf32>
    %23 = vector.broadcast %3 : vector<1x32xf32> to vector<8x32xf32>
    %24 = arith.mulf %22, %23 : vector<8x32xf32>
    %25 = vector.broadcast %4 : vector<1x32xf32> to vector<8x32xf32>
    %26 = arith.addf %24, %25 : vector<8x32xf32>
    %c0_8 = arith.constant 0 : index
    %c0_9 = arith.constant 0 : index
    %c0_10 = arith.constant 0 : index
    %27 = vector.load %arg2[%c0_8, %c0_9, %c0_10] : memref<1x1x8xf32, #tpu.memory_space<vmem>>, vector<1x1x8xf32>
    %28 = vector.shape_cast %27 : vector<1x1x8xf32> to vector<1x8xf32>
    %cst_11 = arith.constant 1.000000e+00 : f32
    %29 = vector.broadcast %cst_11 : f32 to vector<1x8xf32>
    %30 = arith.subf %29, %28 : vector<1x8xf32>
    %cst_12 = arith.constant -1.000000e+09 : f32
    %31 = vector.broadcast %cst_12 : f32 to vector<1x8xf32>
    %32 = arith.mulf %30, %31 : vector<1x8xf32>
    %33 = tpu.iota {dimensions = array<i32: 1>} : vector<1x32xi32>
    %c0_i32 = arith.constant 0 : i32
    %34 = vector.broadcast %c0_i32 : i32 to vector<1x32xi32>
    %35 = arith.cmpi sge, %33, %34 : vector<1x32xi32>
    %c16_i32 = arith.constant 16 : i32
    %36 = vector.broadcast %c16_i32 : i32 to vector<1x32xi32>
    %37 = arith.cmpi slt, %33, %36 : vector<1x32xi32>
    %38 = arith.andi %35, %37 : vector<1x32xi1>
    %39 = arith.extui %38 : vector<1x32xi1> to vector<1x32xi32>
    %40 = arith.sitofp %39 : vector<1x32xi32> to vector<1x32xf32>
    %c16_i32_13 = arith.constant 16 : i32
    %41 = vector.broadcast %c16_i32_13 : i32 to vector<1x32xi32>
    %42 = arith.cmpi sge, %33, %41 : vector<1x32xi32>
    %c32_i32 = arith.constant 32 : i32
    %43 = vector.broadcast %c32_i32 : i32 to vector<1x32xi32>
    %44 = arith.cmpi slt, %33, %43 : vector<1x32xi32>
    %45 = arith.andi %42, %44 : vector<1x32xi1>
    %46 = arith.extui %45 : vector<1x32xi1> to vector<1x32xi32>
    %47 = arith.sitofp %46 : vector<1x32xi32> to vector<1x32xf32>
    %c0_14 = arith.constant 0 : index
    %c0_15 = arith.constant 0 : index
    %c0_16 = arith.constant 0 : index
    %48 = vector.load %arg4[%c0_14, %c0_15, %c0_16] : memref<2x32x96xbf16, #tpu.memory_space<vmem>>, vector<1x32x96xbf16>
    %49 = vector.shape_cast %48 : vector<1x32x96xbf16> to vector<32x96xbf16>
    %50 = arith.truncf %26 : vector<8x32xf32> to vector<8x32xbf16>
    %cst_17 = arith.constant dense<0.000000e+00> : vector<8x96xf32>
    %51 = tpu.matmul %50, %49, %cst_17 {dimension_numbers = #tpu.dot_dimension_numbers<[1], [0], [0], [1], [0, 0, 1, 1], [], []>} : vector<8x32xbf16>, vector<32x96xbf16>, vector<8x96xf32> -> vector<8x96xf32>
    %52 = vector.extract_strided_slice %0 {offsets = [2, 0], sizes = [1, 96], strides = [1, 1]} : vector<20x96xf32> to vector<1x96xf32>
    %53 = vector.broadcast %52 : vector<1x96xf32> to vector<8x96xf32>
    %54 = arith.addf %51, %53 : vector<8x96xf32>
    %55 = vector.extract_strided_slice %54 {offsets = [0, 0], sizes = [8, 32], strides = [1, 1]} : vector<8x96xf32> to vector<8x32xf32>
    %56 = vector.extract_strided_slice %54 {offsets = [0, 32], sizes = [8, 32], strides = [1, 1]} : vector<8x96xf32> to vector<8x32xf32>
    %57 = vector.extract_strided_slice %54 {offsets = [0, 64], sizes = [8, 32], strides = [1, 1]} : vector<8x96xf32> to vector<8x32xf32>
    %cst_18 = arith.constant 0.000000e+00 : f32
    %58 = vector.broadcast %cst_18 : f32 to vector<8x32xf32>
    %59 = vector.broadcast %40 : vector<1x32xf32> to vector<8x32xf32>
    %60 = arith.mulf %55, %59 : vector<8x32xf32>
    %61 = arith.truncf %60 : vector<8x32xf32> to vector<8x32xbf16>
    %62 = arith.truncf %56 : vector<8x32xf32> to vector<8x32xbf16>
    "tpu.trace_start"() <{level = 10 : i32, message = "qd,kd->qk"}> : () -> ()
    %cst_19 = arith.constant dense<0.000000e+00> : vector<8x8xf32>
    %63 = tpu.matmul %61, %62, %cst_19 {dimension_numbers = #tpu.dot_dimension_numbers<[1], [1], [0], [0], [0, 0, 1, 0], [], []>} : vector<8x32xbf16>, vector<8x32xbf16>, vector<8x8xf32> -> vector<8x8xf32>
    "tpu.trace_stop"() : () -> ()
    %64 = vector.broadcast %32 : vector<1x8xf32> to vector<8x8xf32>
    %65 = arith.addf %63, %64 : vector<8x8xf32>
    %cst_20 = arith.constant dense<0xFF800000> : vector<8xf32>
    %66 = vector.multi_reduction <maximumf>, %65, %cst_20 [1] : vector<8x8xf32> to vector<8xf32>
    %67 = vector.shape_cast %66 : vector<8xf32> to vector<8x1xf32>
    %68 = vector.broadcast %67 : vector<8x1xf32> to vector<8x8xf32>
    %69 = arith.subf %65, %68 : vector<8x8xf32>
    %70 = math.exp %69 : vector<8x8xf32>
    %cst_21 = arith.constant dense<0.000000e+00> : vector<8xf32>
    %71 = vector.multi_reduction <add>, %70, %cst_21 [1] : vector<8x8xf32> to vector<8xf32>
    %72 = vector.shape_cast %71 : vector<8xf32> to vector<8x1xf32>
    %73 = tpu.reciprocal %72 {approx = true} : vector<8x1xf32> -> vector<8x1xf32>
    %74 = vector.broadcast %73 : vector<8x1xf32> to vector<8x8xf32>
    %75 = arith.mulf %70, %74 : vector<8x8xf32>
    %76 = arith.truncf %75 : vector<8x8xf32> to vector<8x8xbf16>
    %77 = vector.broadcast %40 : vector<1x32xf32> to vector<8x32xf32>
    %78 = arith.mulf %57, %77 : vector<8x32xf32>
    %79 = arith.truncf %78 : vector<8x32xf32> to vector<8x32xbf16>
    %cst_22 = arith.constant dense<0.000000e+00> : vector<8x32xf32>
    %80 = tpu.matmul %76, %79, %cst_22 {dimension_numbers = #tpu.dot_dimension_numbers<[1], [0], [0], [1], [0, 0, 1, 1], [], []>} : vector<8x8xbf16>, vector<8x32xbf16>, vector<8x32xf32> -> vector<8x32xf32>
    %81 = arith.addf %58, %80 : vector<8x32xf32>
    %82 = vector.broadcast %47 : vector<1x32xf32> to vector<8x32xf32>
    %83 = arith.mulf %55, %82 : vector<8x32xf32>
    %84 = arith.truncf %83 : vector<8x32xf32> to vector<8x32xbf16>
    %85 = arith.truncf %56 : vector<8x32xf32> to vector<8x32xbf16>
    "tpu.trace_start"() <{level = 10 : i32, message = "qd,kd->qk"}> : () -> ()
    %cst_23 = arith.constant dense<0.000000e+00> : vector<8x8xf32>
    %86 = tpu.matmul %84, %85, %cst_23 {dimension_numbers = #tpu.dot_dimension_numbers<[1], [1], [0], [0], [0, 0, 1, 0], [], []>} : vector<8x32xbf16>, vector<8x32xbf16>, vector<8x8xf32> -> vector<8x8xf32>
    "tpu.trace_stop"() : () -> ()
    %87 = vector.broadcast %32 : vector<1x8xf32> to vector<8x8xf32>
    %88 = arith.addf %86, %87 : vector<8x8xf32>
    %cst_24 = arith.constant dense<0xFF800000> : vector<8xf32>
    %89 = vector.multi_reduction <maximumf>, %88, %cst_24 [1] : vector<8x8xf32> to vector<8xf32>
    %90 = vector.shape_cast %89 : vector<8xf32> to vector<8x1xf32>
    %91 = vector.broadcast %90 : vector<8x1xf32> to vector<8x8xf32>
    %92 = arith.subf %88, %91 : vector<8x8xf32>
    %93 = math.exp %92 : vector<8x8xf32>
    %cst_25 = arith.constant dense<0.000000e+00> : vector<8xf32>
    %94 = vector.multi_reduction <add>, %93, %cst_25 [1] : vector<8x8xf32> to vector<8xf32>
    %95 = vector.shape_cast %94 : vector<8xf32> to vector<8x1xf32>
    %96 = tpu.reciprocal %95 {approx = true} : vector<8x1xf32> -> vector<8x1xf32>
    %97 = vector.broadcast %96 : vector<8x1xf32> to vector<8x8xf32>
    %98 = arith.mulf %93, %97 : vector<8x8xf32>
    %99 = arith.truncf %98 : vector<8x8xf32> to vector<8x8xbf16>
    %100 = vector.broadcast %47 : vector<1x32xf32> to vector<8x32xf32>
    %101 = arith.mulf %57, %100 : vector<8x32xf32>
    %102 = arith.truncf %101 : vector<8x32xf32> to vector<8x32xbf16>
    %cst_26 = arith.constant dense<0.000000e+00> : vector<8x32xf32>
    %103 = tpu.matmul %99, %102, %cst_26 {dimension_numbers = #tpu.dot_dimension_numbers<[1], [0], [0], [1], [0, 0, 1, 1], [], []>} : vector<8x8xbf16>, vector<8x32xbf16>, vector<8x32xf32> -> vector<8x32xf32>
    %104 = arith.addf %81, %103 : vector<8x32xf32>
    %c0_27 = arith.constant 0 : index
    %c0_28 = arith.constant 0 : index
    %c0_29 = arith.constant 0 : index
    %105 = vector.load %arg5[%c0_27, %c0_28, %c0_29] : memref<2x32x32xbf16, #tpu.memory_space<vmem>>, vector<1x32x32xbf16>
    %106 = vector.shape_cast %105 : vector<1x32x32xbf16> to vector<32x32xbf16>
    %107 = arith.truncf %104 : vector<8x32xf32> to vector<8x32xbf16>
    %cst_30 = arith.constant dense<0.000000e+00> : vector<8x32xf32>
    %108 = tpu.matmul %107, %106, %cst_30 {dimension_numbers = #tpu.dot_dimension_numbers<[1], [0], [0], [1], [0, 0, 1, 1], [], []>} : vector<8x32xbf16>, vector<32x32xbf16>, vector<8x32xf32> -> vector<8x32xf32>
    %109 = vector.extract_strided_slice %0 {offsets = [3, 0], sizes = [1, 32], strides = [1, 1]} : vector<20x96xf32> to vector<1x32xf32>
    %110 = vector.broadcast %109 : vector<1x32xf32> to vector<8x32xf32>
    %111 = arith.addf %108, %110 : vector<8x32xf32>
    %112 = arith.addf %111, %26 : vector<8x32xf32>
    %113 = vector.extract_strided_slice %0 {offsets = [4, 0], sizes = [1, 32], strides = [1, 1]} : vector<20x96xf32> to vector<1x32xf32>
    %114 = vector.extract_strided_slice %0 {offsets = [5, 0], sizes = [1, 32], strides = [1, 1]} : vector<20x96xf32> to vector<1x32xf32>
    %cst_31 = arith.constant dense<0.000000e+00> : vector<8xf32>
    %115 = vector.multi_reduction <add>, %112, %cst_31 [1] : vector<8x32xf32> to vector<8xf32>
    %116 = vector.shape_cast %115 : vector<8xf32> to vector<8x1xf32>
    %cst_32 = arith.constant 3.200000e+01 : f32
    %117 = vector.broadcast %cst_32 : f32 to vector<8x1xf32>
    %118 = arith.divf %116, %117 : vector<8x1xf32>
    %119 = vector.broadcast %118 : vector<8x1xf32> to vector<8x32xf32>
    %120 = arith.subf %112, %119 : vector<8x32xf32>
    %121 = arith.mulf %120, %120 : vector<8x32xf32>
    %cst_33 = arith.constant dense<0.000000e+00> : vector<8xf32>
    %122 = vector.multi_reduction <add>, %121, %cst_33 [1] : vector<8x32xf32> to vector<8xf32>
    %123 = vector.shape_cast %122 : vector<8xf32> to vector<8x1xf32>
    %cst_34 = arith.constant 3.200000e+01 : f32
    %124 = vector.broadcast %cst_34 : f32 to vector<8x1xf32>
    %125 = arith.divf %123, %124 : vector<8x1xf32>
    %126 = vector.broadcast %118 : vector<8x1xf32> to vector<8x32xf32>
    %127 = arith.subf %112, %126 : vector<8x32xf32>
    %cst_35 = arith.constant 9.99999996E-13 : f32
    %128 = vector.broadcast %cst_35 : f32 to vector<8x1xf32>
    %129 = arith.addf %125, %128 : vector<8x1xf32>
    %130 = math.rsqrt %129 : vector<8x1xf32>
    %131 = vector.broadcast %130 : vector<8x1xf32> to vector<8x32xf32>
    %132 = arith.mulf %127, %131 : vector<8x32xf32>
    %133 = vector.broadcast %113 : vector<1x32xf32> to vector<8x32xf32>
    %134 = arith.mulf %132, %133 : vector<8x32xf32>
    %135 = vector.broadcast %114 : vector<1x32xf32> to vector<8x32xf32>
    %136 = arith.addf %134, %135 : vector<8x32xf32>
    %c0_36 = arith.constant 0 : index
    %c0_37 = arith.constant 0 : index
    %c0_38 = arith.constant 0 : index
    %137 = vector.load %arg6[%c0_36, %c0_37, %c0_38] : memref<2x32x64xbf16, #tpu.memory_space<vmem>>, vector<1x32x64xbf16>
    %138 = vector.shape_cast %137 : vector<1x32x64xbf16> to vector<32x64xbf16>
    %139 = arith.truncf %136 : vector<8x32xf32> to vector<8x32xbf16>
    %cst_39 = arith.constant dense<0.000000e+00> : vector<8x64xf32>
    %140 = tpu.matmul %139, %138, %cst_39 {dimension_numbers = #tpu.dot_dimension_numbers<[1], [0], [0], [1], [0, 0, 1, 1], [], []>} : vector<8x32xbf16>, vector<32x64xbf16>, vector<8x64xf32> -> vector<8x64xf32>
    %141 = vector.extract_strided_slice %0 {offsets = [6, 0], sizes = [1, 64], strides = [1, 1]} : vector<20x96xf32> to vector<1x64xf32>
    %142 = vector.broadcast %141 : vector<1x64xf32> to vector<8x64xf32>
    %143 = arith.addf %140, %142 : vector<8x64xf32>
    %144 = arith.mulf %143, %143 : vector<8x64xf32>
    %145 = arith.mulf %143, %144 : vector<8x64xf32>
    %cst_40 = arith.constant 4.471500e-02 : f32
    %146 = vector.broadcast %cst_40 : f32 to vector<8x64xf32>
    %147 = arith.mulf %146, %145 : vector<8x64xf32>
    %148 = arith.addf %143, %147 : vector<8x64xf32>
    %cst_41 = arith.constant 0.797884583 : f32
    %149 = vector.broadcast %cst_41 : f32 to vector<8x64xf32>
    %150 = arith.mulf %149, %148 : vector<8x64xf32>
    %151 = math.tanh %150 : vector<8x64xf32>
    %cst_42 = arith.constant 1.000000e+00 : f32
    %152 = vector.broadcast %cst_42 : f32 to vector<8x64xf32>
    %153 = arith.addf %152, %151 : vector<8x64xf32>
    %cst_43 = arith.constant 5.000000e-01 : f32
    %154 = vector.broadcast %cst_43 : f32 to vector<8x64xf32>
    %155 = arith.mulf %154, %153 : vector<8x64xf32>
    %156 = arith.mulf %143, %155 : vector<8x64xf32>
    %c0_44 = arith.constant 0 : index
    %c0_45 = arith.constant 0 : index
    %c0_46 = arith.constant 0 : index
    %157 = vector.load %arg7[%c0_44, %c0_45, %c0_46] : memref<2x64x32xbf16, #tpu.memory_space<vmem>>, vector<1x64x32xbf16>
    %158 = vector.shape_cast %157 : vector<1x64x32xbf16> to vector<64x32xbf16>
    %159 = arith.truncf %156 : vector<8x64xf32> to vector<8x64xbf16>
    %cst_47 = arith.constant dense<0.000000e+00> : vector<8x32xf32>
    %160 = tpu.matmul %159, %158, %cst_47 {dimension_numbers = #tpu.dot_dimension_numbers<[1], [0], [0], [1], [0, 0, 1, 1], [], []>} : vector<8x64xbf16>, vector<64x32xbf16>, vector<8x32xf32> -> vector<8x32xf32>
    %161 = vector.extract_strided_slice %0 {offsets = [7, 0], sizes = [1, 32], strides = [1, 1]} : vector<20x96xf32> to vector<1x32xf32>
    %162 = vector.broadcast %161 : vector<1x32xf32> to vector<8x32xf32>
    %163 = arith.addf %160, %162 : vector<8x32xf32>
    %164 = arith.addf %163, %136 : vector<8x32xf32>
    %165 = vector.extract_strided_slice %0 {offsets = [8, 0], sizes = [1, 32], strides = [1, 1]} : vector<20x96xf32> to vector<1x32xf32>
    %166 = vector.extract_strided_slice %0 {offsets = [9, 0], sizes = [1, 32], strides = [1, 1]} : vector<20x96xf32> to vector<1x32xf32>
    %cst_48 = arith.constant dense<0.000000e+00> : vector<8xf32>
    %167 = vector.multi_reduction <add>, %164, %cst_48 [1] : vector<8x32xf32> to vector<8xf32>
    %168 = vector.shape_cast %167 : vector<8xf32> to vector<8x1xf32>
    %cst_49 = arith.constant 3.200000e+01 : f32
    %169 = vector.broadcast %cst_49 : f32 to vector<8x1xf32>
    %170 = arith.divf %168, %169 : vector<8x1xf32>
    %171 = vector.broadcast %170 : vector<8x1xf32> to vector<8x32xf32>
    %172 = arith.subf %164, %171 : vector<8x32xf32>
    %173 = arith.mulf %172, %172 : vector<8x32xf32>
    %cst_50 = arith.constant dense<0.000000e+00> : vector<8xf32>
    %174 = vector.multi_reduction <add>, %173, %cst_50 [1] : vector<8x32xf32> to vector<8xf32>
    %175 = vector.shape_cast %174 : vector<8xf32> to vector<8x1xf32>
    %cst_51 = arith.constant 3.200000e+01 : f32
    %176 = vector.broadcast %cst_51 : f32 to vector<8x1xf32>
    %177 = arith.divf %175, %176 : vector<8x1xf32>
    %178 = vector.broadcast %170 : vector<8x1xf32> to vector<8x32xf32>
    %179 = arith.subf %164, %178 : vector<8x32xf32>
    %cst_52 = arith.constant 9.99999996E-13 : f32
    %180 = vector.broadcast %cst_52 : f32 to vector<8x1xf32>
    %181 = arith.addf %177, %180 : vector<8x1xf32>
    %182 = math.rsqrt %181 : vector<8x1xf32>
    %183 = vector.broadcast %182 : vector<8x1xf32> to vector<8x32xf32>
    %184 = arith.mulf %179, %183 : vector<8x32xf32>
    %185 = vector.broadcast %165 : vector<1x32xf32> to vector<8x32xf32>
    %186 = arith.mulf %184, %185 : vector<8x32xf32>
    %187 = vector.broadcast %166 : vector<1x32xf32> to vector<8x32xf32>
    %188 = arith.addf %186, %187 : vector<8x32xf32>
    %c1 = arith.constant 1 : index
    %c0_53 = arith.constant 0 : index
    %c0_54 = arith.constant 0 : index
    %189 = vector.load %arg4[%c1, %c0_53, %c0_54] : memref<2x32x96xbf16, #tpu.memory_space<vmem>>, vector<1x32x96xbf16>
    %190 = vector.shape_cast %189 : vector<1x32x96xbf16> to vector<32x96xbf16>
    %191 = arith.truncf %188 : vector<8x32xf32> to vector<8x32xbf16>
    %cst_55 = arith.constant dense<0.000000e+00> : vector<8x96xf32>
    %192 = tpu.matmul %191, %190, %cst_55 {dimension_numbers = #tpu.dot_dimension_numbers<[1], [0], [0], [1], [0, 0, 1, 1], [], []>} : vector<8x32xbf16>, vector<32x96xbf16>, vector<8x96xf32> -> vector<8x96xf32>
    %193 = vector.extract_strided_slice %0 {offsets = [10, 0], sizes = [1, 96], strides = [1, 1]} : vector<20x96xf32> to vector<1x96xf32>
    %194 = vector.broadcast %193 : vector<1x96xf32> to vector<8x96xf32>
    %195 = arith.addf %192, %194 : vector<8x96xf32>
    %196 = vector.extract_strided_slice %195 {offsets = [0, 0], sizes = [8, 32], strides = [1, 1]} : vector<8x96xf32> to vector<8x32xf32>
    %197 = vector.extract_strided_slice %195 {offsets = [0, 32], sizes = [8, 32], strides = [1, 1]} : vector<8x96xf32> to vector<8x32xf32>
    %198 = vector.extract_strided_slice %195 {offsets = [0, 64], sizes = [8, 32], strides = [1, 1]} : vector<8x96xf32> to vector<8x32xf32>
    %cst_56 = arith.constant 0.000000e+00 : f32
    %199 = vector.broadcast %cst_56 : f32 to vector<8x32xf32>
    %200 = vector.broadcast %40 : vector<1x32xf32> to vector<8x32xf32>
    %201 = arith.mulf %196, %200 : vector<8x32xf32>
    %202 = arith.truncf %201 : vector<8x32xf32> to vector<8x32xbf16>
    %203 = arith.truncf %197 : vector<8x32xf32> to vector<8x32xbf16>
    "tpu.trace_start"() <{level = 10 : i32, message = "qd,kd->qk"}> : () -> ()
    %cst_57 = arith.constant dense<0.000000e+00> : vector<8x8xf32>
    %204 = tpu.matmul %202, %203, %cst_57 {dimension_numbers = #tpu.dot_dimension_numbers<[1], [1], [0], [0], [0, 0, 1, 0], [], []>} : vector<8x32xbf16>, vector<8x32xbf16>, vector<8x8xf32> -> vector<8x8xf32>
    "tpu.trace_stop"() : () -> ()
    %205 = vector.broadcast %32 : vector<1x8xf32> to vector<8x8xf32>
    %206 = arith.addf %204, %205 : vector<8x8xf32>
    %cst_58 = arith.constant dense<0xFF800000> : vector<8xf32>
    %207 = vector.multi_reduction <maximumf>, %206, %cst_58 [1] : vector<8x8xf32> to vector<8xf32>
    %208 = vector.shape_cast %207 : vector<8xf32> to vector<8x1xf32>
    %209 = vector.broadcast %208 : vector<8x1xf32> to vector<8x8xf32>
    %210 = arith.subf %206, %209 : vector<8x8xf32>
    %211 = math.exp %210 : vector<8x8xf32>
    %cst_59 = arith.constant dense<0.000000e+00> : vector<8xf32>
    %212 = vector.multi_reduction <add>, %211, %cst_59 [1] : vector<8x8xf32> to vector<8xf32>
    %213 = vector.shape_cast %212 : vector<8xf32> to vector<8x1xf32>
    %214 = tpu.reciprocal %213 {approx = true} : vector<8x1xf32> -> vector<8x1xf32>
    %215 = vector.broadcast %214 : vector<8x1xf32> to vector<8x8xf32>
    %216 = arith.mulf %211, %215 : vector<8x8xf32>
    %217 = arith.truncf %216 : vector<8x8xf32> to vector<8x8xbf16>
    %218 = vector.broadcast %40 : vector<1x32xf32> to vector<8x32xf32>
    %219 = arith.mulf %198, %218 : vector<8x32xf32>
    %220 = arith.truncf %219 : vector<8x32xf32> to vector<8x32xbf16>
    %cst_60 = arith.constant dense<0.000000e+00> : vector<8x32xf32>
    %221 = tpu.matmul %217, %220, %cst_60 {dimension_numbers = #tpu.dot_dimension_numbers<[1], [0], [0], [1], [0, 0, 1, 1], [], []>} : vector<8x8xbf16>, vector<8x32xbf16>, vector<8x32xf32> -> vector<8x32xf32>
    %222 = arith.addf %199, %221 : vector<8x32xf32>
    %223 = vector.broadcast %47 : vector<1x32xf32> to vector<8x32xf32>
    %224 = arith.mulf %196, %223 : vector<8x32xf32>
    %225 = arith.truncf %224 : vector<8x32xf32> to vector<8x32xbf16>
    %226 = arith.truncf %197 : vector<8x32xf32> to vector<8x32xbf16>
    "tpu.trace_start"() <{level = 10 : i32, message = "qd,kd->qk"}> : () -> ()
    %cst_61 = arith.constant dense<0.000000e+00> : vector<8x8xf32>
    %227 = tpu.matmul %225, %226, %cst_61 {dimension_numbers = #tpu.dot_dimension_numbers<[1], [1], [0], [0], [0, 0, 1, 0], [], []>} : vector<8x32xbf16>, vector<8x32xbf16>, vector<8x8xf32> -> vector<8x8xf32>
    "tpu.trace_stop"() : () -> ()
    %228 = vector.broadcast %32 : vector<1x8xf32> to vector<8x8xf32>
    %229 = arith.addf %227, %228 : vector<8x8xf32>
    %cst_62 = arith.constant dense<0xFF800000> : vector<8xf32>
    %230 = vector.multi_reduction <maximumf>, %229, %cst_62 [1] : vector<8x8xf32> to vector<8xf32>
    %231 = vector.shape_cast %230 : vector<8xf32> to vector<8x1xf32>
    %232 = vector.broadcast %231 : vector<8x1xf32> to vector<8x8xf32>
    %233 = arith.subf %229, %232 : vector<8x8xf32>
    %234 = math.exp %233 : vector<8x8xf32>
    %cst_63 = arith.constant dense<0.000000e+00> : vector<8xf32>
    %235 = vector.multi_reduction <add>, %234, %cst_63 [1] : vector<8x8xf32> to vector<8xf32>
    %236 = vector.shape_cast %235 : vector<8xf32> to vector<8x1xf32>
    %237 = tpu.reciprocal %236 {approx = true} : vector<8x1xf32> -> vector<8x1xf32>
    %238 = vector.broadcast %237 : vector<8x1xf32> to vector<8x8xf32>
    %239 = arith.mulf %234, %238 : vector<8x8xf32>
    %240 = arith.truncf %239 : vector<8x8xf32> to vector<8x8xbf16>
    %241 = vector.broadcast %47 : vector<1x32xf32> to vector<8x32xf32>
    %242 = arith.mulf %198, %241 : vector<8x32xf32>
    %243 = arith.truncf %242 : vector<8x32xf32> to vector<8x32xbf16>
    %cst_64 = arith.constant dense<0.000000e+00> : vector<8x32xf32>
    %244 = tpu.matmul %240, %243, %cst_64 {dimension_numbers = #tpu.dot_dimension_numbers<[1], [0], [0], [1], [0, 0, 1, 1], [], []>} : vector<8x8xbf16>, vector<8x32xbf16>, vector<8x32xf32> -> vector<8x32xf32>
    %245 = arith.addf %222, %244 : vector<8x32xf32>
    %c1_65 = arith.constant 1 : index
    %c0_66 = arith.constant 0 : index
    %c0_67 = arith.constant 0 : index
    %246 = vector.load %arg5[%c1_65, %c0_66, %c0_67] : memref<2x32x32xbf16, #tpu.memory_space<vmem>>, vector<1x32x32xbf16>
    %247 = vector.shape_cast %246 : vector<1x32x32xbf16> to vector<32x32xbf16>
    %248 = arith.truncf %245 : vector<8x32xf32> to vector<8x32xbf16>
    %cst_68 = arith.constant dense<0.000000e+00> : vector<8x32xf32>
    %249 = tpu.matmul %248, %247, %cst_68 {dimension_numbers = #tpu.dot_dimension_numbers<[1], [0], [0], [1], [0, 0, 1, 1], [], []>} : vector<8x32xbf16>, vector<32x32xbf16>, vector<8x32xf32> -> vector<8x32xf32>
    %250 = vector.extract_strided_slice %0 {offsets = [11, 0], sizes = [1, 32], strides = [1, 1]} : vector<20x96xf32> to vector<1x32xf32>
    %251 = vector.broadcast %250 : vector<1x32xf32> to vector<8x32xf32>
    %252 = arith.addf %249, %251 : vector<8x32xf32>
    %253 = arith.addf %252, %188 : vector<8x32xf32>
    %254 = vector.extract_strided_slice %0 {offsets = [12, 0], sizes = [1, 32], strides = [1, 1]} : vector<20x96xf32> to vector<1x32xf32>
    %255 = vector.extract_strided_slice %0 {offsets = [13, 0], sizes = [1, 32], strides = [1, 1]} : vector<20x96xf32> to vector<1x32xf32>
    %cst_69 = arith.constant dense<0.000000e+00> : vector<8xf32>
    %256 = vector.multi_reduction <add>, %253, %cst_69 [1] : vector<8x32xf32> to vector<8xf32>
    %257 = vector.shape_cast %256 : vector<8xf32> to vector<8x1xf32>
    %cst_70 = arith.constant 3.200000e+01 : f32
    %258 = vector.broadcast %cst_70 : f32 to vector<8x1xf32>
    %259 = arith.divf %257, %258 : vector<8x1xf32>
    %260 = vector.broadcast %259 : vector<8x1xf32> to vector<8x32xf32>
    %261 = arith.subf %253, %260 : vector<8x32xf32>
    %262 = arith.mulf %261, %261 : vector<8x32xf32>
    %cst_71 = arith.constant dense<0.000000e+00> : vector<8xf32>
    %263 = vector.multi_reduction <add>, %262, %cst_71 [1] : vector<8x32xf32> to vector<8xf32>
    %264 = vector.shape_cast %263 : vector<8xf32> to vector<8x1xf32>
    %cst_72 = arith.constant 3.200000e+01 : f32
    %265 = vector.broadcast %cst_72 : f32 to vector<8x1xf32>
    %266 = arith.divf %264, %265 : vector<8x1xf32>
    %267 = vector.broadcast %259 : vector<8x1xf32> to vector<8x32xf32>
    %268 = arith.subf %253, %267 : vector<8x32xf32>
    %cst_73 = arith.constant 9.99999996E-13 : f32
    %269 = vector.broadcast %cst_73 : f32 to vector<8x1xf32>
    %270 = arith.addf %266, %269 : vector<8x1xf32>
    %271 = math.rsqrt %270 : vector<8x1xf32>
    %272 = vector.broadcast %271 : vector<8x1xf32> to vector<8x32xf32>
    %273 = arith.mulf %268, %272 : vector<8x32xf32>
    %274 = vector.broadcast %254 : vector<1x32xf32> to vector<8x32xf32>
    %275 = arith.mulf %273, %274 : vector<8x32xf32>
    %276 = vector.broadcast %255 : vector<1x32xf32> to vector<8x32xf32>
    %277 = arith.addf %275, %276 : vector<8x32xf32>
    %c1_74 = arith.constant 1 : index
    %c0_75 = arith.constant 0 : index
    %c0_76 = arith.constant 0 : index
    %278 = vector.load %arg6[%c1_74, %c0_75, %c0_76] : memref<2x32x64xbf16, #tpu.memory_space<vmem>>, vector<1x32x64xbf16>
    %279 = vector.shape_cast %278 : vector<1x32x64xbf16> to vector<32x64xbf16>
    %280 = arith.truncf %277 : vector<8x32xf32> to vector<8x32xbf16>
    %cst_77 = arith.constant dense<0.000000e+00> : vector<8x64xf32>
    %281 = tpu.matmul %280, %279, %cst_77 {dimension_numbers = #tpu.dot_dimension_numbers<[1], [0], [0], [1], [0, 0, 1, 1], [], []>} : vector<8x32xbf16>, vector<32x64xbf16>, vector<8x64xf32> -> vector<8x64xf32>
    %282 = vector.extract_strided_slice %0 {offsets = [14, 0], sizes = [1, 64], strides = [1, 1]} : vector<20x96xf32> to vector<1x64xf32>
    %283 = vector.broadcast %282 : vector<1x64xf32> to vector<8x64xf32>
    %284 = arith.addf %281, %283 : vector<8x64xf32>
    %285 = arith.mulf %284, %284 : vector<8x64xf32>
    %286 = arith.mulf %284, %285 : vector<8x64xf32>
    %cst_78 = arith.constant 4.471500e-02 : f32
    %287 = vector.broadcast %cst_78 : f32 to vector<8x64xf32>
    %288 = arith.mulf %287, %286 : vector<8x64xf32>
    %289 = arith.addf %284, %288 : vector<8x64xf32>
    %cst_79 = arith.constant 0.797884583 : f32
    %290 = vector.broadcast %cst_79 : f32 to vector<8x64xf32>
    %291 = arith.mulf %290, %289 : vector<8x64xf32>
    %292 = math.tanh %291 : vector<8x64xf32>
    %cst_80 = arith.constant 1.000000e+00 : f32
    %293 = vector.broadcast %cst_80 : f32 to vector<8x64xf32>
    %294 = arith.addf %293, %292 : vector<8x64xf32>
    %cst_81 = arith.constant 5.000000e-01 : f32
    %295 = vector.broadcast %cst_81 : f32 to vector<8x64xf32>
    %296 = arith.mulf %295, %294 : vector<8x64xf32>
    %297 = arith.mulf %284, %296 : vector<8x64xf32>
    %c1_82 = arith.constant 1 : index
    %c0_83 = arith.constant 0 : index
    %c0_84 = arith.constant 0 : index
    %298 = vector.load %arg7[%c1_82, %c0_83, %c0_84] : memref<2x64x32xbf16, #tpu.memory_space<vmem>>, vector<1x64x32xbf16>
    %299 = vector.shape_cast %298 : vector<1x64x32xbf16> to vector<64x32xbf16>
    %300 = arith.truncf %297 : vector<8x64xf32> to vector<8x64xbf16>
    %cst_85 = arith.constant dense<0.000000e+00> : vector<8x32xf32>
    %301 = tpu.matmul %300, %299, %cst_85 {dimension_numbers = #tpu.dot_dimension_numbers<[1], [0], [0], [1], [0, 0, 1, 1], [], []>} : vector<8x64xbf16>, vector<64x32xbf16>, vector<8x32xf32> -> vector<8x32xf32>
    %302 = vector.extract_strided_slice %0 {offsets = [15, 0], sizes = [1, 32], strides = [1, 1]} : vector<20x96xf32> to vector<1x32xf32>
    %303 = vector.broadcast %302 : vector<1x32xf32> to vector<8x32xf32>
    %304 = arith.addf %301, %303 : vector<8x32xf32>
    %305 = arith.addf %304, %277 : vector<8x32xf32>
    %306 = vector.extract_strided_slice %0 {offsets = [16, 0], sizes = [1, 32], strides = [1, 1]} : vector<20x96xf32> to vector<1x32xf32>
    %307 = vector.extract_strided_slice %0 {offsets = [17, 0], sizes = [1, 32], strides = [1, 1]} : vector<20x96xf32> to vector<1x32xf32>
    %cst_86 = arith.constant dense<0.000000e+00> : vector<8xf32>
    %308 = vector.multi_reduction <add>, %305, %cst_86 [1] : vector<8x32xf32> to vector<8xf32>
    %309 = vector.shape_cast %308 : vector<8xf32> to vector<8x1xf32>
    %cst_87 = arith.constant 3.200000e+01 : f32
    %310 = vector.broadcast %cst_87 : f32 to vector<8x1xf32>
    %311 = arith.divf %309, %310 : vector<8x1xf32>
    %312 = vector.broadcast %311 : vector<8x1xf32> to vector<8x32xf32>
    %313 = arith.subf %305, %312 : vector<8x32xf32>
    %314 = arith.mulf %313, %313 : vector<8x32xf32>
    %cst_88 = arith.constant dense<0.000000e+00> : vector<8xf32>
    %315 = vector.multi_reduction <add>, %314, %cst_88 [1] : vector<8x32xf32> to vector<8xf32>
    %316 = vector.shape_cast %315 : vector<8xf32> to vector<8x1xf32>
    %cst_89 = arith.constant 3.200000e+01 : f32
    %317 = vector.broadcast %cst_89 : f32 to vector<8x1xf32>
    %318 = arith.divf %316, %317 : vector<8x1xf32>
    %319 = vector.broadcast %311 : vector<8x1xf32> to vector<8x32xf32>
    %320 = arith.subf %305, %319 : vector<8x32xf32>
    %cst_90 = arith.constant 9.99999996E-13 : f32
    %321 = vector.broadcast %cst_90 : f32 to vector<8x1xf32>
    %322 = arith.addf %318, %321 : vector<8x1xf32>
    %323 = math.rsqrt %322 : vector<8x1xf32>
    %324 = vector.broadcast %323 : vector<8x1xf32> to vector<8x32xf32>
    %325 = arith.mulf %320, %324 : vector<8x32xf32>
    %326 = vector.broadcast %306 : vector<1x32xf32> to vector<8x32xf32>
    %327 = arith.mulf %325, %326 : vector<8x32xf32>
    %328 = vector.broadcast %307 : vector<1x32xf32> to vector<8x32xf32>
    %329 = arith.addf %327, %328 : vector<8x32xf32>
    %cst_91 = arith.constant 1.250000e-01 : f32
    %330 = vector.broadcast %cst_91 : f32 to vector<1x8xf32>
    %cst_92 = arith.constant dense<0.000000e+00> : vector<1x32xf32>
    %331 = tpu.matmul %330, %329, %cst_92 {dimension_numbers = #tpu.dot_dimension_numbers<[1], [0], [0], [1], [0, 0, 1, 1], [], []>} : vector<1x8xf32>, vector<8x32xf32>, vector<1x32xf32> -> vector<1x32xf32>
    %c0_93 = arith.constant 0 : index
    %c0_94 = arith.constant 0 : index
    %332 = vector.load %arg8[%c0_93, %c0_94] : memref<33x16xbf16, #tpu.memory_space<vmem>>, vector<33x16xbf16>
    %333 = vector.extract_strided_slice %332 {offsets = [0, 0], sizes = [32, 16], strides = [1, 1]} : vector<33x16xbf16> to vector<32x16xbf16>
    %334 = arith.truncf %331 : vector<1x32xf32> to vector<1x32xbf16>
    %cst_95 = arith.constant dense<0.000000e+00> : vector<1x16xf32>
    %335 = tpu.matmul %334, %333, %cst_95 {dimension_numbers = #tpu.dot_dimension_numbers<[1], [0], [0], [1], [0, 0, 1, 1], [], []>} : vector<1x32xbf16>, vector<32x16xbf16>, vector<1x16xf32> -> vector<1x16xf32>
    %336 = vector.extract_strided_slice %0 {offsets = [18, 0], sizes = [1, 16], strides = [1, 1]} : vector<20x96xf32> to vector<1x16xf32>
    %337 = arith.addf %335, %336 : vector<1x16xf32>
    %cst_96 = arith.constant 0.000000e+00 : f32
    %338 = vector.broadcast %cst_96 : f32 to vector<1x16xf32>
    %339 = arith.maximumf %337, %338 : vector<1x16xf32>
    %340 = vector.extract_strided_slice %332 {offsets = [32, 0], sizes = [1, 16], strides = [1, 1]} : vector<33x16xbf16> to vector<1x16xbf16>
    %341 = arith.extf %340 : vector<1x16xbf16> to vector<1x16xf32>
    %342 = arith.mulf %339, %341 : vector<1x16xf32>
    %cst_97 = arith.constant dense<0.000000e+00> : vector<1xf32>
    %343 = vector.multi_reduction <add>, %342, %cst_97 [1] : vector<1x16xf32> to vector<1xf32>
    %344 = vector.shape_cast %343 : vector<1xf32> to vector<1x1xf32>
    %345 = vector.extract_strided_slice %0 {offsets = [19, 0], sizes = [1, 1], strides = [1, 1]} : vector<20x96xf32> to vector<1x1xf32>
    %346 = arith.addf %344, %345 : vector<1x1xf32>
    %cst_98 = arith.constant 0.000000e+00 : f32
    %347 = vector.broadcast %cst_98 : f32 to vector<1x95xf32>
    %348 = tpu.concatenate %331, %346, %347 in 1 : vector<1x32xf32>, vector<1x1xf32>, vector<1x95xf32> -> vector<1x128xf32>
    %c0_99 = arith.constant 0 : index
    %c0_100 = arith.constant 0 : index
    %c0_101 = arith.constant 0 : index
    %349 = vector.load %arg9[%c0_99, %c0_100, %c0_101] : memref<1x1x128xf32, #tpu.memory_space<vmem>>, vector<1x1x128xf32>
    %350 = vector.shape_cast %349 : vector<1x1x128xf32> to vector<1x128xf32>
    %351 = vector.shape_cast %348 : vector<1x128xf32> to vector<1x1x128xf32>
    tpu.vector_store %arg9[%c0_99, %c0_100, %c0_101], %351 {strides = array<i32>} : memref<1x1x128xf32, #tpu.memory_space<vmem>>, vector<1x1x128xf32>,
    return
  }
  func.func @transform_0(%arg0: i32) -> (i32, i32, i32) {
    %c0_i32 = arith.constant 0 : i32
    %c0_i32_0 = arith.constant 0 : i32
    %c0_i32_1 = arith.constant 0 : i32
    return %arg0, %c0_i32, %c0_i32_0 : i32, i32, i32
  }
  func.func @transform_1(%arg0: i32) -> (i32, i32, i32) {
    %c0_i32 = arith.constant 0 : i32
    %c0_i32_0 = arith.constant 0 : i32
    %c0_i32_1 = arith.constant 0 : i32
    return %arg0, %c0_i32, %c0_i32_0 : i32, i32, i32
  }
  func.func @transform_2(%arg0: i32) -> (i32, i32) {
    %c0_i32 = arith.constant 0 : i32
    %c0_i32_0 = arith.constant 0 : i32
    %c0_i32_1 = arith.constant 0 : i32
    return %c0_i32, %c0_i32_0 : i32, i32
  }
  func.func @transform_3(%arg0: i32) -> (i32, i32, i32) {
    %c0_i32 = arith.constant 0 : i32
    %c0_i32_0 = arith.constant 0 : i32
    %c0_i32_1 = arith.constant 0 : i32
    %c0_i32_2 = arith.constant 0 : i32
    return %c0_i32, %c0_i32_0, %c0_i32_1 : i32, i32, i32
  }
  func.func @transform_4(%arg0: i32) -> (i32, i32, i32) {
    %c0_i32 = arith.constant 0 : i32
    %c0_i32_0 = arith.constant 0 : i32
    %c0_i32_1 = arith.constant 0 : i32
    %c0_i32_2 = arith.constant 0 : i32
    return %c0_i32, %c0_i32_0, %c0_i32_1 : i32, i32, i32
  }
  func.func @transform_5(%arg0: i32) -> (i32, i32, i32) {
    %c0_i32 = arith.constant 0 : i32
    %c0_i32_0 = arith.constant 0 : i32
    %c0_i32_1 = arith.constant 0 : i32
    %c0_i32_2 = arith.constant 0 : i32
    return %c0_i32, %c0_i32_0, %c0_i32_1 : i32, i32, i32
  }
  func.func @transform_6(%arg0: i32) -> (i32, i32, i32) {
    %c0_i32 = arith.constant 0 : i32
    %c0_i32_0 = arith.constant 0 : i32
    %c0_i32_1 = arith.constant 0 : i32
    %c0_i32_2 = arith.constant 0 : i32
    return %c0_i32, %c0_i32_0, %c0_i32_1 : i32, i32, i32
  }
  func.func @transform_7(%arg0: i32) -> (i32, i32) {
    %c0_i32 = arith.constant 0 : i32
    %c0_i32_0 = arith.constant 0 : i32
    %c0_i32_1 = arith.constant 0 : i32
    return %c0_i32, %c0_i32_0 : i32, i32
  }
  func.func @transform_8(%arg0: i32) -> (i32, i32, i32) {
    %c0_i32 = arith.constant 0 : i32
    %c0_i32_0 = arith.constant 0 : i32
    %c0_i32_1 = arith.constant 0 : i32
    return %arg0, %c0_i32, %c0_i32_0 : i32, i32, i32
  }
}

</mosaic_0001>

<llo_original>
// kernel: tpu_custom_call.1
$region0: #{tpu_custom_call.1}
  #allocation0 [shape = 'u32[]', space=smem, size = 0x4, offset = 0x4, fixed_abs, tag = 'smem constant byte address 0x4 - core index']
  #allocation1 [shape = 'u32[144,128]{1,0:T(1,128)}', space=vmem, size = 0x12000, scoped, tag = 'internal scratch']
  %s0 = inlined_call_operand.hbm [shape: f32[2,8,32], index: 0, kind: input, shape index: {}]
  %s1 = inlined_call_operand.hbm [shape: f32[2,1,8], index: 1, kind: input, shape index: {}]
  %s2 = inlined_call_operand.hbm [shape: f32[20,96], index: 2, kind: input, shape index: {}]
  %s3 = inlined_call_operand.vmem [shape: bf16[2,32,96], index: 3, kind: input, shape index: {}]
  %s4 = inlined_call_operand.vmem [shape: bf16[2,32,32], index: 4, kind: input, shape index: {}]
  %s5 = inlined_call_operand.vmem [shape: bf16[2,32,64], index: 5, kind: input, shape index: {}]
  %s6 = inlined_call_operand.vmem [shape: bf16[2,64,32], index: 6, kind: input, shape index: {}]
  %s7 = inlined_call_operand.vmem [shape: bf16[33,16], index: 7, kind: input, shape index: {}]
  %s8 = inlined_call_operand.hbm [shape: f32[2,1,128], index: 8, kind: output, shape index: {}]
  %s9 = sld [smem:[#allocation0]]
  $region77: #{tpu_custom_call.1} parent=0
    _
  %s11 = ssub.s32 1, %s9
  %s12 = scalar_select 0, %s11, %s9
  $region1: #{tpu_custom_call.1} parent=0
    #allocation2 [shape = 'u8[8192]{0}', space=vmem, size = 0x2000, scoped, tag = 'input window, operand 0']
    #allocation3 [shape = 's32[2]{0}', space=sflag, size = 0x8, scoped, tag = 'scoped memory for tpu_custom_call.1']
    #allocation4 [shape = 's32[2]{0}', space=sflag, size = 0x8, scoped, tag = 'scoped memory for tpu_custom_call.1']
    #allocation5 [shape = 'u8[1024]{0}', space=vmem, size = 0x400, scoped, tag = 'input window, operand 1']
    #allocation6 [shape = 's32[2]{0}', space=sflag, size = 0x8, scoped, tag = 'scoped memory for tpu_custom_call.1']
    #allocation7 [shape = 'u8[12288]{0}', space=vmem, size = 0x3000, scoped, tag = 'input window, operand 2, single buffered']
    #allocation8 [shape = 'u8[1024]{0}', space=vmem, size = 0x400, scoped, tag = 'output window, operand 0']
    %13 = vsyncpa [#allocation3], 0
    %s14 = scalar_lea.sflag [#allocation3], 1
    %15 = vsyncpa %s14, 0
    %16 = vsyncpa [#allocation6], 0
    %s17 = scalar_lea.sflag [#allocation6], 1
    %18 = vsyncpa %s17, 0
    %19 = vsyncpa [#allocation4], 0
    %s20 = scalar_lea.sflag [#allocation4], 1
    %21 = vsyncpa %s20, 0
    loop: start=0, step=1, limit=4
    $region2: #{tpu_custom_call.1} parent=1 // loop_pre_header
      _
    $region3: #{tpu_custom_call.1} parent=1 // loop_header
      %s23 = sphi 0, %s27
      %p24 = scmp.ge.s32.totalorder %s23, 4
      %s33 = sphi 0, %s35
      %s36 = sphi 0, %s33
      %s37 = sphi 0, %s36
      %s53 = sphi 0, %s37
      %s59 = sphi 0, %s61
      %s62 = sphi 0, %s59
      %s63 = sphi 0, %s62
      %s79 = sphi 0, %s63
      %s83 = sphi 0, %s83
      %s85 = sphi 0, %s83
      %s86 = sphi 0, %s85
      %s100 = sphi 0, %s86
      %s104 = sphi 0, %s104
      %s106 = sphi 0, %s104
      %s107 = sphi 0, %s106
      %s121 = sphi 0, %s107
      %s125 = sphi 0, %s125
      %s127 = sphi 0, %s125
      %s128 = sphi 0, %s127
      %s142 = sphi 0, %s128
      %s146 = sphi 0, %s146
      %s148 = sphi 0, %s146
      %s149 = sphi 0, %s148
      %s163 = sphi 0, %s149
      %s167 = sphi 0, %s167
      %s169 = sphi 0, %s167
      %s170 = sphi 0, %s169
      %s184 = sphi 0, %s170
      %s188 = sphi 0, %s188
      %s190 = sphi 0, %s188
      %s191 = sphi 0, %s190
      %s205 = sphi 0, %s191
      %s211 = sphi 0, %s213
      %s214 = sphi 0, %s211
      %s215 = sphi 0, %s214
      %s231 = sphi 0, %s215
    $region4: #{tpu_custom_call.1} parent=1 // loop_header_branch
      %26 = sbr.rel (%p24) target = $region8
    $region5: #{tpu_custom_call.1} parent=1 // loop_body
      %s28 = ssub.s32 %s23, 1
      %s29 = ssub.s32 %s23, 2
      %s30 = sadd.s32 %s23, 1
      %s31 = ssub.s32 %s23, %s30
      %p32 = scmp.eq.s32.totalorder %s31, 0
      %s34 = sadd.s32 %s33, 1
      %s35 = scalar_select %p32, %s33, %s34
      %p38 = pneg %p32
      %p39 = scmp.eq.s32.totalorder %s23, 1
      %p40 = por %p38, %p39
      %p41 = scmp.ne.s32.totalorder %s33, %s36
      %p42 = scmp.eq.s32.totalorder %s23, 0
      %p43 = por %p41, %p42
      %p44 = scmp.ne.s32.totalorder %s33, %s36
      %p45 = scmp.eq.s32.totalorder %s28, 1
      %p46 = por %p44, %p45
      %p47 = scmp.ne.s32.totalorder %s36, %s37
      %p48 = scmp.eq.s32.totalorder %s28, 0
      %p49 = por %p47, %p48
      %p50 = scmp.ne.s32.totalorder %s36, %s37
      %p51 = scmp.eq.s32.totalorder %s29, 1
      %p52 = por %p50, %p51
      %p54 = scmp.ne.s32.totalorder %s37, %s53
      %p55 = scmp.eq.s32.totalorder %s29, 0
      %p56 = por %p54, %p55
      %s57 = ssub.s32 %s23, %s30
      %p58 = scmp.eq.s32.totalorder %s57, 0
      %s60 = sadd.s32 %s59, 1
      %s61 = scalar_select %p58, %s59, %s60
      %p64 = pneg %p58
      %p65 = scmp.eq.s32.totalorder %s23, 1
      %p66 = por %p64, %p65
      %p67 = scmp.ne.s32.totalorder %s59, %s62
      %p68 = scmp.eq.s32.totalorder %s23, 0
      %p69 = por %p67, %p68
      %p70 = scmp.ne.s32.totalorder %s59, %s62
      %p71 = scmp.eq.s32.totalorder %s28, 1
      %p72 = por %p70, %p71
      %p73 = scmp.ne.s32.totalorder %s62, %s63
      %p74 = scmp.eq.s32.totalorder %s28, 0
      %p75 = por %p73, %p74
      %p76 = scmp.ne.s32.totalorder %s62, %s63
      %p77 = scmp.eq.s32.totalorder %s29, 1
      %p78 = por %p76, %p77
      %p80 = scmp.ne.s32.totalorder %s63, %s79
      %p81 = scmp.eq.s32.totalorder %s29, 0
      %p82 = por %p80, %p81
      %s84 = sadd.s32 %s83, 1
      %p87 = scmp.eq.s32.totalorder %s23, 1
      %p88 = scmp.ne.s32.totalorder %s83, %s85
      %p89 = scmp.eq.s32.totalorder %s23, 0
      %p90 = por %p88, %p89
      %p91 = scmp.ne.s32.totalorder %s83, %s85
      %p92 = scmp.eq.s32.totalorder %s28, 1
      %p93 = por %p91, %p92
      %p94 = scmp.ne.s32.totalorder %s85, %s86
      %p95 = scmp.eq.s32.totalorder %s28, 0
      %p96 = por %p94, %p95
      %p97 = scmp.ne.s32.totalorder %s85, %s86
      %p98 = scmp.eq.s32.totalorder %s29, 1
      %p99 = por %p97, %p98
      %p101 = scmp.ne.s32.totalorder %s86, %s100
      %p102 = scmp.eq.s32.totalorder %s29, 0
      %p103 = por %p101, %p102
      %s105 = sadd.s32 %s104, 1
      %p108 = scmp.eq.s32.totalorder %s23, 1
      %p109 = scmp.ne.s32.totalorder %s104, %s106
      %p110 = scmp.eq.s32.totalorder %s23, 0
      %p111 = por %p109, %p110
      %p112 = scmp.ne.s32.totalorder %s104, %s106
      %p113 = scmp.eq.s32.totalorder %s28, 1
      %p114 = por %p112, %p113
      %p115 = scmp.ne.s32.totalorder %s106, %s107
      %p116 = scmp.eq.s32.totalorder %s28, 0
      %p117 = por %p115, %p116
      %p118 = scmp.ne.s32.totalorder %s106, %s107
      %p119 = scmp.eq.s32.totalorder %s29, 1
      %p120 = por %p118, %p119
      %p122 = scmp.ne.s32.totalorder %s107, %s121
      %p123 = scmp.eq.s32.totalorder %s29, 0
      %p124 = por %p122, %p123
      %s126 = sadd.s32 %s125, 1
      %p129 = scmp.eq.s32.totalorder %s23, 1
      %p130 = scmp.ne.s32.totalorder %s125, %s127
      %p131 = scmp.eq.s32.totalorder %s23, 0
      %p132 = por %p130, %p131
      %p133 = scmp.ne.s32.totalorder %s125, %s127
      %p134 = scmp.eq.s32.totalorder %s28, 1
      %p135 = por %p133, %p134
      %p136 = scmp.ne.s32.totalorder %s127, %s128
      %p137 = scmp.eq.s32.totalorder %s28, 0
      %p138 = por %p136, %p137
      %p139 = scmp.ne.s32.totalorder %s127, %s128
      %p140 = scmp.eq.s32.totalorder %s29, 1
      %p141 = por %p139, %p140
      %p143 = scmp.ne.s32.totalorder %s128, %s142
      %p144 = scmp.eq.s32.totalorder %s29, 0
      %p145 = por %p143, %p144
      %s147 = sadd.s32 %s146, 1
      %p150 = scmp.eq.s32.totalorder %s23, 1
      %p151 = scmp.ne.s32.totalorder %s146, %s148
      %p152 = scmp.eq.s32.totalorder %s23, 0
      %p153 = por %p151, %p152
      %p154 = scmp.ne.s32.totalorder %s146, %s148
      %p155 = scmp.eq.s32.totalorder %s28, 1
      %p156 = por %p154, %p155
      %p157 = scmp.ne.s32.totalorder %s148, %s149
      %p158 = scmp.eq.s32.totalorder %s28, 0
      %p159 = por %p157, %p158
      %p160 = scmp.ne.s32.totalorder %s148, %s149
      %p161 = scmp.eq.s32.totalorder %s29, 1
      %p162 = por %p160, %p161
      %p164 = scmp.ne.s32.totalorder %s149, %s163
      %p165 = scmp.eq.s32.totalorder %s29, 0
      %p166 = por %p164, %p165
      %s168 = sadd.s32 %s167, 1
      %p171 = scmp.eq.s32.totalorder %s23, 1
      %p172 = scmp.ne.s32.totalorder %s167, %s169
      %p173 = scmp.eq.s32.totalorder %s23, 0
      %p174 = por %p172, %p173
      %p175 = scmp.ne.s32.totalorder %s167, %s169
      %p176 = scmp.eq.s32.totalorder %s28, 1
      %p177 = por %p175, %p176
      %p178 = scmp.ne.s32.totalorder %s169, %s170
      %p179 = scmp.eq.s32.totalorder %s28, 0
      %p180 = por %p178, %p179
      %p181 = scmp.ne.s32.totalorder %s169, %s170
      %p182 = scmp.eq.s32.totalorder %s29, 1
      %p183 = por %p181, %p182
      %p185 = scmp.ne.s32.totalorder %s170, %s184
      %p186 = scmp.eq.s32.totalorder %s29, 0
      %p187 = por %p185, %p186
      %s189 = sadd.s32 %s188, 1
      %p192 = scmp.eq.s32.totalorder %s23, 1
      %p193 = scmp.ne.s32.totalorder %s188, %s190
      %p194 = scmp.eq.s32.totalorder %s23, 0
      %p195 = por %p193, %p194
      %p196 = scmp.ne.s32.totalorder %s188, %s190
      %p197 = scmp.eq.s32.totalorder %s28, 1
      %p198 = por %p196, %p197
      %p199 = scmp.ne.s32.totalorder %s190, %s191
      %p200 = scmp.eq.s32.totalorder %s28, 0
      %p201 = por %p199, %p200
      %p202 = scmp.ne.s32.totalorder %s190, %s191
      %p203 = scmp.eq.s32.totalorder %s29, 1
      %p204 = por %p202, %p203
      %p206 = scmp.ne.s32.totalorder %s191, %s205
      %p207 = scmp.eq.s32.totalorder %s29, 0
      %p208 = por %p206, %p207
      %s209 = ssub.s32 %s23, %s30
      %p210 = scmp.eq.s32.totalorder %s209, 0
      %s212 = sadd.s32 %s211, 1
      %s213 = scalar_select %p210, %s211, %s212
      %p216 = pneg %p210
      %p217 = scmp.eq.s32.totalorder %s23, 1
      %p218 = por %p216, %p217
      %p219 = scmp.ne.s32.totalorder %s211, %s214
      %p220 = scmp.eq.s32.totalorder %s23, 0
      %p221 = por %p219, %p220
      %p222 = scmp.ne.s32.totalorder %s211, %s214
      %p223 = scmp.eq.s32.totalorder %s28, 1
      %p224 = por %p222, %p223
      %p225 = scmp.ne.s32.totalorder %s214, %s215
      %p226 = scmp.eq.s32.totalorder %s28, 0
      %p227 = por %p225, %p226
      %p228 = scmp.ne.s32.totalorder %s214, %s215
      %p229 = scmp.eq.s32.totalorder %s29, 1
      %p230 = por %p228, %p229
      %p232 = scmp.ne.s32.totalorder %s215, %s231
      %p233 = scmp.eq.s32.totalorder %s29, 0
      %p234 = por %p232, %p233
      %p235 = scmp.le.s32.totalorder 1, %s23
      %p236 = scmp.lt.s32.totalorder %s23, 3
      %p237 = pnand %p235, %p236
      %p238 = pneg %p237
      // Predicated region
      $region9: #{tpu_custom_call.1} parent=5 // pred_check
        _
      $region10: #{tpu_custom_call.1} parent=5 // pred_check_branch
        %240 = sbr.rel (%p237) target = $region12
      $region11: #{tpu_custom_call.1} parent=5 // pred_region
        %s241 = ssub.s32 %s23, 1
        // Predicated region
        $region13: #{tpu_custom_call.1} parent=11 // pred_check
          %p242 = pneg %p96
        $region14: #{tpu_custom_call.1} parent=11 // pred_check_branch
          %244 = sbr.rel (%p242) target = $region16
        $region15: #{tpu_custom_call.1} parent=11 // pred_region
          %s246 = ssub.s32 384, 384
          %247 = vsyncadd [#allocation6], %s246
          %s248 = sshll.u32 [#allocation7], 4
          %s249 = int_to_ptr.vmem [resolvable:$true] %s248
          %254 = dma.hbm_to_vmem [thread:$0]  %s2, 384, %s249, [#allocation6], 128, 128, 8
        $region16: #{tpu_custom_call.1} parent=11 // pred_fallthru
          _
        // Predicated region
        $region17: #{tpu_custom_call.1} parent=11 // pred_check
          %p255 = pneg %p117
        $region18: #{tpu_custom_call.1} parent=11 // pred_check_branch
          %257 = sbr.rel (%p255) target = $region20
        $region19: #{tpu_custom_call.1} parent=11 // pred_region
          _
        $region20: #{tpu_custom_call.1} parent=11 // pred_fallthru
          _
        // Predicated region
        $region21: #{tpu_custom_call.1} parent=11 // pred_check
          %p258 = pneg %p138
        $region22: #{tpu_custom_call.1} parent=11 // pred_check_branch
          %260 = sbr.rel (%p258) target = $region24
        $region23: #{tpu_custom_call.1} parent=11 // pred_region
          _
        $region24: #{tpu_custom_call.1} parent=11 // pred_fallthru
          _
        // Predicated region
        $region25: #{tpu_custom_call.1} parent=11 // pred_check
          %p261 = pneg %p159
        $region26: #{tpu_custom_call.1} parent=11 // pred_check_branch
          %263 = sbr.rel (%p261) target = $region28
        $region27: #{tpu_custom_call.1} parent=11 // pred_region
          _
        $region28: #{tpu_custom_call.1} parent=11 // pred_fallthru
          _
        // Predicated region
        $region29: #{tpu_custom_call.1} parent=11 // pred_check
          %p264 = pneg %p180
        $region30: #{tpu_custom_call.1} parent=11 // pred_check_branch
          %266 = sbr.rel (%p264) target = $region32
        $region31: #{tpu_custom_call.1} parent=11 // pred_region
          _
        $region32: #{tpu_custom_call.1} parent=11 // pred_fallthru
          _
        // Predicated region
        $region33: #{tpu_custom_call.1} parent=11 // pred_check
          %p267 = pneg %p201
        $region34: #{tpu_custom_call.1} parent=11 // pred_check_branch
          %269 = sbr.rel (%p267) target = $region36
        $region35: #{tpu_custom_call.1} parent=11 // pred_region
          _
        $region36: #{tpu_custom_call.1} parent=11 // pred_fallthru
          _
      $region12: #{tpu_custom_call.1} parent=5 // pred_fallthru
        _
      %p270 = scmp.lt.s32.totalorder %s23, 2
      // Predicated region
      $region37: #{tpu_custom_call.1} parent=5 // pred_check
        %p271 = pneg %p270
      $region38: #{tpu_custom_call.1} parent=5 // pred_check_branch
        %273 = sbr.rel (%p271) target = $region40
      $region39: #{tpu_custom_call.1} parent=5 // pred_region
        // Predicated region
        $region41: #{tpu_custom_call.1} parent=39 // pred_check
          %p274 = pneg %p43
        $region42: #{tpu_custom_call.1} parent=39 // pred_check_branch
          %276 = sbr.rel (%p274) target = $region44
        $region43: #{tpu_custom_call.1} parent=39 // pred_region
          %s277 = sand.u32 %s33, 1
          %s278 = scalar_lea.sflag [#allocation3], %s277
          %s279 = sand.u32 %s33, 1
          %s280 = smul.addr %s279, 8
          %s281 = scalar_lea.vmem [#allocation2], %s280
          %s283 = ssub.s32 128, 128
          %284 = vsyncadd %s278, %s283
          %s285 = smul.addr %s23, 128
          %s286 = scalar_lea.hbm %s0, %s285
          %s288 = sshll.u32 %s281, 4
          %s289 = int_to_ptr.vmem [resolvable:$true] %s288
          %291 = dma.hbm_to_vmem [thread:$0]  %s286, 128, %s289, %s278
        $region44: #{tpu_custom_call.1} parent=39 // pred_fallthru
          _
        // Predicated region
        $region45: #{tpu_custom_call.1} parent=39 // pred_check
          %p292 = pneg %p69
        $region46: #{tpu_custom_call.1} parent=39 // pred_check_branch
          %294 = sbr.rel (%p292) target = $region48
        $region47: #{tpu_custom_call.1} parent=39 // pred_region
          %s295 = sand.u32 %s23, 1
          %s296 = scalar_lea.sflag [#allocation6], %s295
          %s297 = sand.u32 %s59, 1
          %s298 = scalar_lea.vmem [#allocation5], %s297
          %s300 = ssub.s32 16, 16
          %301 = vsyncadd %s296, %s300
          %s302 = smul.addr %s23, 16
          %s303 = scalar_lea.hbm %s1, %s302
          %s305 = sshll.u32 %s298, 4
          %s306 = int_to_ptr.vmem [resolvable:$true] %s305
          %308 = dma.hbm_to_vmem [thread:$0]  %s303, 16, %s306, %s296
        $region48: #{tpu_custom_call.1} parent=39 // pred_fallthru
          _
      $region40: #{tpu_custom_call.1} parent=5 // pred_fallthru
        _
      %p309 = scmp.le.s32.totalorder 1, %s23
      %p310 = scmp.lt.s32.totalorder %s23, 3
      %p311 = pnand %p309, %p310
      %p312 = pneg %p311
      // Predicated region
      $region49: #{tpu_custom_call.1} parent=5 // pred_check
        _
      $region50: #{tpu_custom_call.1} parent=5 // pred_check_branch
        %314 = sbr.rel (%p311) target = $region52
      $region51: #{tpu_custom_call.1} parent=5 // pred_region
        %s315 = ssub.s32 %s23, 1
        %s316 = sand.u32 %s36, 1
        %s317 = scalar_lea.sflag [#allocation3], %s316
        %s318 = sand.u32 %s36, 1
        %s319 = smul.addr %s318, 8
        %s320 = scalar_lea.vmem [#allocation2], %s319
        // Predicated region
        $region53: #{tpu_custom_call.1} parent=51 // pred_check
          %p321 = pneg %p49
        $region54: #{tpu_custom_call.1} parent=51 // pred_check_branch
          %323 = sbr.rel (%p321) target = $region56
        $region55: #{tpu_custom_call.1} parent=51 // pred_region
          %324 = dma.done %s317, 128
        $region56: #{tpu_custom_call.1} parent=51 // pred_fallthru
          _
        %s325 = sand.u32 %s28, 1
        %s326 = scalar_lea.sflag [#allocation6], %s325
        %s327 = sand.u32 %s62, 1
        %s328 = scalar_lea.vmem [#allocation5], %s327
        // Predicated region
        $region57: #{tpu_custom_call.1} parent=51 // pred_check
          %p329 = pneg %p75
        $region58: #{tpu_custom_call.1} parent=51 // pred_check_branch
          %331 = sbr.rel (%p329) target = $region60
        $region59: #{tpu_custom_call.1} parent=51 // pred_region
          %332 = dma.done %s326, 16
        $region60: #{tpu_custom_call.1} parent=51 // pred_fallthru
          _
        // Predicated region
        $region61: #{tpu_custom_call.1} parent=51 // pred_check
          %p333 = pneg %p96
        $region62: #{tpu_custom_call.1} parent=51 // pred_check_branch
          %335 = sbr.rel (%p333) target = $region64
        $region63: #{tpu_custom_call.1} parent=51 // pred_region
          %336 = dma.done [#allocation6], 384
        $region64: #{tpu_custom_call.1} parent=51 // pred_fallthru
          _
        %s337 = sand.u32 %s36, 1
        %s338 = scalar_lea.sflag [#allocation3], %s337
        %s339 = sand.u32 %s36, 1
        %s340 = smul.addr %s339, 8
        %s341 = scalar_lea.vmem [#allocation2], %s340
        %p342 = pneg %p49
        %p343 = pneg %p46
        %s344 = sand.u32 %s28, 1
        %s345 = scalar_lea.sflag [#allocation6], %s344
        %s346 = sand.u32 %s62, 1
        %s347 = scalar_lea.vmem [#allocation5], %s346
        %p348 = pneg %p75
        %p349 = pneg %p72
        %p350 = pneg %p96
        %p351 = pneg %p93
        %p352 = pneg %p117
        %p353 = pneg %p114
        %p354 = pneg %p138
        %p355 = pneg %p135
        %p356 = pneg %p159
        %p357 = pneg %p156
        %p358 = pneg %p180
        %p359 = pneg %p177
        %p360 = pneg %p201
        %p361 = pneg %p198
        %p362 = pneg %p227
        %p363 = pneg %p224
        %s364 = sand.u32 %s214, 1
        %s365 = scalar_lea.sflag [#allocation4], %s364
        %s366 = sand.u32 %s214, 1
        %s367 = scalar_lea.vmem [#allocation8], %s366
        %v369 = vld [vmem:[#allocation7] sm:$0xff]
        %v370 = vld [vmem:[#allocation7 + $0x8] sm:$0xff]
        %v371 = vld [vmem:[#allocation7 + $0x10] sm:$0xf]
        %v372 = vld [vmem:[%s320] sm:$0xff]
        %vm373 = vcmask 261120
        %v374 = vsel %vm373, %v372, 0.0
        %375 = vadd.xlane.f32.xlu0 %v374
        %v376 = vpop.xlane.xlu0 %375
        %v377 = vrcp.pop 32.0
        %v378 = vmul.f32 %v376, %v377
        %v379 = vsub.f32 %v372, %v378
        %v380 = vmul.f32 %v379, %v379
        %v381 = vsel %vm373, %v380, 0.0
        %382 = vadd.xlane.f32.xlu0 %v381
        %v383 = vpop.xlane.xlu0 %382
        %v384 = vmul.f32 %v383, %v377
        %v385 = vadd.f32 %v384, 1e-12
        %v386 = vrsqrt.pop %v385
        %v387 = vmul.f32 %v379, %v386
        %v388 = vlaneseq
        %v389 = vshrl.u32 %v388, 7
        %v390 = vsub.s32 0, %v389
        %v391 = vrot.slane %v369, %v390
        %v392 = vmul.f32 %v387, %v391
        %v393 = vlaneseq
        %v394 = vshrl.u32 %v393, 7
        %v395 = vsub.s32 1, %v394
        %v396 = vrot.slane %v369, %v395
        %v397 = vadd.f32 %v392, %v396
        %v398 = vld [vmem:[%s328] sm:$0x1]
        %v399 = vsub.f32 1.0, %v398
        %v400 = vmul.f32 %v399, -1e+09
        %v401 = vlaneseq
        %v402 = vand.u32 %v401, 127
        %vm403 = vcmp.ge.s32.totalorder %v402, 0
        %vm404 = vcmp.lt.s32.totalorder %v402, 16
        %vm405 = vmand %vm403, %vm404
        %v406 = vsel %vm405, 1, 0
        %v407 = vcvt.s32.f32 %v406
        %vm408 = vcmp.ge.s32.totalorder %v402, 16
        %vm409 = vcmp.lt.s32.totalorder %v402, 32
        %vm410 = vmand %vm408, %vm409
        %v411 = vsel %vm410, 1, 0
        %v412 = vcvt.s32.f32 %v411
        %v413 = vld [vmem:[%s3] sm:$0xf]
        %v414 = vld [vmem:[%s3 + $0x4] sm:$0xf]
        %v415 = vld [vmem:[%s3 + $0x8] sm:$0xf]
        %v416 = vld [vmem:[%s3 + $0xc] sm:$0xf]
        %v417 = vpack.c.bf16 %v397, %v397
        %v418 = vlaneseq
        %v419 = vshrl.u32 %v418, 7
        %v420 = vsub.s32 2, %v419
        %v421 = vrot.slane %v369, %v420
        %v426 = vunpack.c.l.b16 %v413
        %v427 = vunpack.c.l.b16 %v414
        %v428 = vunpack.c.l.b16 %v415
        %v429 = vunpack.c.l.b16 %v416
        %v430 = vpack.c.b16 %v427, %v426
        %v431 = vpack.c.b16 %v429, %v428
        %v435 = vsel %vm373, %v417, 0
        %437 = vmatprep.subr.bf16.mxu0 0
        %438 = vmatpush1.bf16.msra.mxu0 0
        %439 = vmatprep.subr.bf16.mxu0 0
        %440 = vmatpush1.bf16.msra.mxu0 0
        %441 = vmatprep.subr.bf16.mxu0 0
        %442 = vmatpush1.bf16.msra.mxu0 0
        %443 = vmatprep.subr.bf16.mxu0 0
        %444 = vmatpush1.bf16.msra.mxu0 0
        %445 = vmatprep.subr.bf16.mxu0 0
        %446 = vmatpush1.bf16.msra.mxu0 0
        %447 = vmatprep.subr.bf16.mxu0 0
        %448 = vmatpush1.bf16.msra.mxu0 0
        %449 = vmatprep.subr.bf16.mxu0 0
        %450 = vmatpush1.bf16.msra.mxu0 %v431
        %451 = vmatprep.subr.bf16.mxu0 0
        %452 = vmatpush1.bf16.msra.mxu0 %v430
        %453 = vmatprep.subr.bf16.mxu0 0
        %454 = vmatpush2.bf16.msra.mxu0 0
        %455 = vmatprep.subr.bf16.mxu0 0
        %456 = vmatpush2.bf16.msra.mxu0 0
        %457 = vmatprep.subr.bf16.mxu0 0
        %458 = vmatpush2.bf16.msra.mxu0 0
        %459 = vmatprep.subr.bf16.mxu0 0
        %460 = vmatpush2.bf16.msra.mxu0 0
        %461 = vmatprep.subr.bf16.mxu0 0
        %462 = vmatpush2.bf16.msra.mxu0 0
        %463 = vmatprep.subr.bf16.mxu0 0
        %464 = vmatpush2.bf16.msra.mxu0 0
        %465 = vmatprep.subr.bf16.mxu0 0
        %466 = vmatpush2.bf16.msra.mxu0 0
        %467 = vmatprep.subr.bf16.mxu0 0
        %468 = vmatpush2.bf16.msra.mxu0 0
        %469 = vmatprep.mubr.bf16.mxu0 0
        %470 = vmatmul.mubr.bf16.gmra.mxu0 %v435
        %v471 = vpop.f32.mrf.mxu0
        %v472 = vadd.f32 %v421, %v471
        %v473 = vpop.f32.mrf.mxu0
        %v474 = vpop.f32.mrf.mxu0
        %v475 = vpop.f32.mrf.mxu0
        %476 = vdwg.mxu0
        %v477 = vmul.f32 %v472, %v407
        %v478 = vpack.c.bf16 %v477, %v477
        %v479 = vpack.c.bf16 %v472, %v472
        %v481 = vlaneseq
        %v482 = vshrl.u32 %v481, 7
        %v483 = vsub.s32 0, %v482
        %v484 = vrot.slane %v400, %v483
        %487 = vrot.lane.b32.xlu0 %v479, 96
        %v488 = vpop.permute.xlu0 %487
        %v490 = vsel %vm373, %v478, 0
        %v493 = vsel %vm373, %v488, 0
        %495 = vmatprep.subr.bf16.mxu0 0
        %496 = vmatpush1.bf16.xpose.msra.mxu0 0
        %497 = vmatprep.subr.bf16.mxu0 0
        %498 = vmatpush1.bf16.xpose.msra.mxu0 0
        %499 = vmatprep.subr.bf16.mxu0 0
        %500 = vmatpush1.bf16.xpose.msra.mxu0 0
        %501 = vmatprep.subr.bf16.mxu0 0
        %502 = vmatpush1.bf16.xpose.msra.mxu0 0
        %503 = vmatprep.subr.bf16.mxu0 0
        %504 = vmatpush1.bf16.xpose.msra.mxu0 0
        %505 = vmatprep.subr.bf16.mxu0 0
        %506 = vmatpush1.bf16.xpose.msra.mxu0 0
        %507 = vmatprep.subr.bf16.mxu0 0
        %508 = vmatpush1.bf16.xpose.msra.mxu0 0
        %509 = vmatprep.subr.bf16.mxu0 0
        %510 = vmatpush1.bf16.xpose.msra.mxu0 %v493
        %511 = vmatprep.subr.bf16.mxu0 0
        %512 = vmatpush2.bf16.xpose.msra.mxu0 0
        %513 = vmatprep.subr.bf16.mxu0 0
        %514 = vmatpush2.bf16.xpose.msra.mxu0 0
        %515 = vmatprep.subr.bf16.mxu0 0
        %516 = vmatpush2.bf16.xpose.msra.mxu0 0
        %517 = vmatprep.subr.bf16.mxu0 0
        %518 = vmatpush2.bf16.xpose.msra.mxu0 0
        %519 = vmatprep.subr.bf16.mxu0 0
        %520 = vmatpush2.bf16.xpose.msra.mxu0 0
        %521 = vmatprep.subr.bf16.mxu0 0
        %522 = vmatpush2.bf16.xpose.msra.mxu0 0
        %523 = vmatprep.subr.bf16.mxu0 0
        %524 = vmatpush2.bf16.xpose.msra.mxu0 0
        %525 = vmatprep.subr.bf16.mxu0 0
        %526 = vmatpush2.bf16.xpose.msra.mxu0 0
        %527 = vmatprep.mubr.bf16.mxu0 0
        %528 = vmatmul.mubr.bf16.gmra.mxu0 %v490
        %v529 = vpop.f32.mrf.mxu0
        %v530 = vadd.f32 %v484, %v529
        %v531 = vpop.f32.mrf.mxu0
        %v532 = vpop.f32.mrf.mxu0
        %v533 = vpop.f32.mrf.mxu0
        %534 = vdwg.mxu0
        %vm535 = vcmask 64512
        %v536 = vsel %vm535, %v530, -inf
        %537 = vmax.xlane.f32.xlu0 %v536
        %v538 = vpop.xlane.xlu0 %537
        %v539 = vsub.f32 %v530, %v538
        %v540 = vmul.f32 %v539, 1.442695
        %v541 = vpow.pop %v540
        %v542 = vsel %vm535, %v541, 0.0
        %543 = vadd.xlane.f32.xlu0 %v542
        %v544 = vpop.xlane.xlu0 %543
        %v545 = vrcp.pop %v544
        %v546 = vmul.f32 %v541, %v545
        %v547 = vpack.c.bf16 %v546, %v546
        %549 = vrot.lane.b32.xlu0 %v407, 64
        %v550 = vpop.permute.xlu0 %549
        %v552 = vmul.f32 %v472, %v550
        %v553 = vpack.c.bf16 %v552, %v552
        %v554 = vmul.f32 %v472, %v412
        %v555 = vpack.c.bf16 %v554, %v554
        %v557 = vsel %vm373, %v555, 0
        %559 = vmatprep.subr.bf16.mxu0 0
        %560 = vmatpush1.bf16.xpose.msra.mxu0 0
        %561 = vmatprep.subr.bf16.mxu0 0
        %562 = vmatpush1.bf16.xpose.msra.mxu0 0
        %563 = vmatprep.subr.bf16.mxu0 0
        %564 = vmatpush1.bf16.xpose.msra.mxu0 0
        %565 = vmatprep.subr.bf16.mxu0 0
        %566 = vmatpush1.bf16.xpose.msra.mxu0 0
        %567 = vmatprep.subr.bf16.mxu0 0
        %568 = vmatpush1.bf16.xpose.msra.mxu0 0
        %569 = vmatprep.subr.bf16.mxu0 0
        %570 = vmatpush1.bf16.xpose.msra.mxu0 0
        %571 = vmatprep.subr.bf16.mxu0 0
        %572 = vmatpush1.bf16.xpose.msra.mxu0 0
        %573 = vmatprep.subr.bf16.mxu0 0
        %574 = vmatpush1.bf16.xpose.msra.mxu0 %v493
        %575 = vmatprep.subr.bf16.mxu0 0
        %576 = vmatpush2.bf16.xpose.msra.mxu0 0
        %577 = vmatprep.subr.bf16.mxu0 0
        %578 = vmatpush2.bf16.xpose.msra.mxu0 0
        %579 = vmatprep.subr.bf16.mxu0 0
        %580 = vmatpush2.bf16.xpose.msra.mxu0 0
        %581 = vmatprep.subr.bf16.mxu0 0
        %582 = vmatpush2.bf16.xpose.msra.mxu0 0
        %583 = vmatprep.subr.bf16.mxu0 0
        %584 = vmatpush2.bf16.xpose.msra.mxu0 0
        %585 = vmatprep.subr.bf16.mxu0 0
        %586 = vmatpush2.bf16.xpose.msra.mxu0 0
        %587 = vmatprep.subr.bf16.mxu0 0
        %588 = vmatpush2.bf16.xpose.msra.mxu0 0
        %589 = vmatprep.subr.bf16.mxu0 0
        %590 = vmatpush2.bf16.xpose.msra.mxu0 0
        %591 = vmatprep.mubr.bf16.mxu0 0
        %592 = vmatmul.mubr.bf16.gmra.mxu0 %v557
        %v593 = vpop.f32.mrf.mxu0
        %v594 = vadd.f32 %v484, %v593
        %v595 = vpop.f32.mrf.mxu0
        %v596 = vpop.f32.mrf.mxu0
        %v597 = vpop.f32.mrf.mxu0
        %598 = vdwg.mxu0
        %v599 = vsel %vm535, %v594, -inf
        %600 = vmax.xlane.f32.xlu0 %v599
        %v601 = vpop.xlane.xlu0 %600
        %v602 = vsub.f32 %v594, %v601
        %v603 = vmul.f32 %v602, 1.442695
        %v604 = vpow.pop %v603
        %v605 = vsel %vm535, %v604, 0.0
        %606 = vadd.xlane.f32.xlu0 %v605
        %v607 = vpop.xlane.xlu0 %606
        %v608 = vrcp.pop %v607
        %v609 = vmul.f32 %v604, %v608
        %v610 = vpack.c.bf16 %v609, %v609
        %612 = vrot.lane.b32.xlu0 %v412, 64
        %v613 = vpop.permute.xlu0 %612
        %v615 = vmul.f32 %v472, %v613
        %v616 = vpack.c.bf16 %v615, %v615
        %618 = vrot.lane.b32.xlu0 %v616, 64
        %v619 = vpop.permute.xlu0 %618
        %v621 = vsel %vm535, %v610, 0
        %vm623 = vcmask 1043456
        %v625 = vsel %vm623, %v619, 0
        %627 = vmatprep.subr.bf16.mxu0 0
        %628 = vmatpush1.bf16.msra.mxu0 0
        %629 = vmatprep.subr.bf16.mxu0 0
        %630 = vmatpush1.bf16.msra.mxu0 0
        %631 = vmatprep.subr.bf16.mxu0 0
        %632 = vmatpush1.bf16.msra.mxu0 0
        %633 = vmatprep.subr.bf16.mxu0 0
        %634 = vmatpush1.bf16.msra.mxu0 0
        %635 = vmatprep.subr.bf16.mxu0 0
        %636 = vmatpush1.bf16.msra.mxu0 0
        %637 = vmatprep.subr.bf16.mxu0 0
        %638 = vmatpush1.bf16.msra.mxu0 0
        %639 = vmatprep.subr.bf16.mxu0 0
        %640 = vmatpush1.bf16.msra.mxu0 0
        %641 = vmatprep.subr.bf16.mxu0 0
        %642 = vmatpush1.bf16.msra.mxu0 %v625
        %643 = vmatprep.subr.bf16.mxu0 0
        %644 = vmatpush2.bf16.msra.mxu0 0
        %645 = vmatprep.subr.bf16.mxu0 0
        %646 = vmatpush2.bf16.msra.mxu0 0
        %647 = vmatprep.subr.bf16.mxu0 0
        %648 = vmatpush2.bf16.msra.mxu0 0
        %649 = vmatprep.subr.bf16.mxu0 0
        %650 = vmatpush2.bf16.msra.mxu0 0
        %651 = vmatprep.subr.bf16.mxu0 0
        %652 = vmatpush2.bf16.msra.mxu0 0
        %653 = vmatprep.subr.bf16.mxu0 0
        %654 = vmatpush2.bf16.msra.mxu0 0
        %655 = vmatprep.subr.bf16.mxu0 0
        %656 = vmatpush2.bf16.msra.mxu0 0
        %657 = vmatprep.subr.bf16.mxu0 0
        %658 = vmatpush2.bf16.msra.mxu0 0
        %659 = vmatprep.mubr.bf16.mxu0 0
        %660 = vmatmul.mubr.bf16.gmra.mxu0 %v621
        %v661 = vpop.f32.mrf.mxu0
        %v662 = vadd.f32 0.0, %v661
        %v663 = vpop.f32.mrf.mxu0
        %v664 = vpop.f32.mrf.mxu0
        %v665 = vpop.f32.mrf.mxu0
        %666 = vdwg.mxu0
        %668 = vrot.lane.b32.xlu0 %v553, 64
        %v669 = vpop.permute.xlu0 %668
        %v671 = vsel %vm535, %v547, 0
        %v674 = vsel %vm623, %v669, 0
        %676 = vmatprep.subr.bf16.mxu0 0
        %677 = vmatpush1.bf16.msra.mxu0 0
        %678 = vmatprep.subr.bf16.mxu0 0
        %679 = vmatpush1.bf16.msra.mxu0 0
        %680 = vmatprep.subr.bf16.mxu0 0
        %681 = vmatpush1.bf16.msra.mxu0 0
        %682 = vmatprep.subr.bf16.mxu0 0
        %683 = vmatpush1.bf16.msra.mxu0 0
        %684 = vmatprep.subr.bf16.mxu0 0
        %685 = vmatpush1.bf16.msra.mxu0 0
        %686 = vmatprep.subr.bf16.mxu0 0
        %687 = vmatpush1.bf16.msra.mxu0 0
        %688 = vmatprep.subr.bf16.mxu0 0
        %689 = vmatpush1.bf16.msra.mxu0 0
        %690 = vmatprep.subr.bf16.mxu0 0
        %691 = vmatpush1.bf16.msra.mxu0 %v674
        %692 = vmatprep.subr.bf16.mxu0 0
        %693 = vmatpush2.bf16.msra.mxu0 0
        %694 = vmatprep.subr.bf16.mxu0 0
        %695 = vmatpush2.bf16.msra.mxu0 0
        %696 = vmatprep.subr.bf16.mxu0 0
        %697 = vmatpush2.bf16.msra.mxu0 0
        %698 = vmatprep.subr.bf16.mxu0 0
        %699 = vmatpush2.bf16.msra.mxu0 0
        %700 = vmatprep.subr.bf16.mxu0 0
        %701 = vmatpush2.bf16.msra.mxu0 0
        %702 = vmatprep.subr.bf16.mxu0 0
        %703 = vmatpush2.bf16.msra.mxu0 0
        %704 = vmatprep.subr.bf16.mxu0 0
        %705 = vmatpush2.bf16.msra.mxu0 0
        %706 = vmatprep.subr.bf16.mxu0 0
        %707 = vmatpush2.bf16.msra.mxu0 0
        %708 = vmatprep.mubr.bf16.mxu0 0
        %709 = vmatmul.mubr.bf16.gmra.mxu0 %v671
        %v710 = vpop.f32.mrf.mxu0
        %v711 = vadd.f32 %v662, %v710
        %v712 = vpop.f32.mrf.mxu0
        %v713 = vpop.f32.mrf.mxu0
        %v714 = vpop.f32.mrf.mxu0
        %715 = vdwg.mxu0
        %v716 = vld [vmem:[%s4] sm:$0xf]
        %v717 = vld [vmem:[%s4 + $0x4] sm:$0xf]
        %v718 = vld [vmem:[%s4 + $0x8] sm:$0xf]
        %v719 = vld [vmem:[%s4 + $0xc] sm:$0xf]
        %v720 = vpack.c.bf16 %v711, %v711
        %v721 = vlaneseq
        %v722 = vshrl.u32 %v721, 7
        %v723 = vsub.s32 3, %v722
        %v724 = vrot.slane %v369, %v723
        %v729 = vunpack.c.l.b16 %v716
        %v730 = vunpack.c.l.b16 %v717
        %v731 = vunpack.c.l.b16 %v718
        %v732 = vunpack.c.l.b16 %v719
        %v733 = vpack.c.b16 %v730, %v729
        %v734 = vpack.c.b16 %v732, %v731
        %v738 = vsel %vm373, %v720, 0
        %740 = vmatprep.subr.bf16.mxu0 0
        %741 = vmatpush1.bf16.msra.mxu0 0
        %742 = vmatprep.subr.bf16.mxu0 0
        %743 = vmatpush1.bf16.msra.mxu0 0
        %744 = vmatprep.subr.bf16.mxu0 0
        %745 = vmatpush1.bf16.msra.mxu0 0
        %746 = vmatprep.subr.bf16.mxu0 0
        %747 = vmatpush1.bf16.msra.mxu0 0
        %748 = vmatprep.subr.bf16.mxu0 0
        %749 = vmatpush1.bf16.msra.mxu0 0
        %750 = vmatprep.subr.bf16.mxu0 0
        %751 = vmatpush1.bf16.msra.mxu0 0
        %752 = vmatprep.subr.bf16.mxu0 0
        %753 = vmatpush1.bf16.msra.mxu0 %v734
        %754 = vmatprep.subr.bf16.mxu0 0
        %755 = vmatpush1.bf16.msra.mxu0 %v733
        %756 = vmatprep.subr.bf16.mxu0 0
        %757 = vmatpush2.bf16.msra.mxu0 0
        %758 = vmatprep.subr.bf16.mxu0 0
        %759 = vmatpush2.bf16.msra.mxu0 0
        %760 = vmatprep.subr.bf16.mxu0 0
        %761 = vmatpush2.bf16.msra.mxu0 0
        %762 = vmatprep.subr.bf16.mxu0 0
        %763 = vmatpush2.bf16.msra.mxu0 0
        %764 = vmatprep.subr.bf16.mxu0 0
        %765 = vmatpush2.bf16.msra.mxu0 0
        %766 = vmatprep.subr.bf16.mxu0 0
        %767 = vmatpush2.bf16.msra.mxu0 0
        %768 = vmatprep.subr.bf16.mxu0 0
        %769 = vmatpush2.bf16.msra.mxu0 0
        %770 = vmatprep.subr.bf16.mxu0 0
        %771 = vmatpush2.bf16.msra.mxu0 0
        %772 = vmatprep.mubr.bf16.mxu0 0
        %773 = vmatmul.mubr.bf16.gmra.mxu0 %v738
        %v774 = vpop.f32.mrf.mxu0
        %v775 = vadd.f32 %v724, %v774
        %v776 = vpop.f32.mrf.mxu0
        %v777 = vpop.f32.mrf.mxu0
        %v778 = vpop.f32.mrf.mxu0
        %779 = vdwg.mxu0
        %v780 = vadd.f32 %v775, %v397
        %v781 = vsel %vm373, %v780, 0.0
        %782 = vadd.xlane.f32.xlu0 %v781
        %v783 = vpop.xlane.xlu0 %782
        %v784 = vmul.f32 %v783, %v377
        %v785 = vsub.f32 %v780, %v784
        %v786 = vmul.f32 %v785, %v785
        %v787 = vsel %vm373, %v786, 0.0
        %788 = vadd.xlane.f32.xlu0 %v787
        %v789 = vpop.xlane.xlu0 %788
        %v790 = vmul.f32 %v789, %v377
        %v791 = vadd.f32 %v790, 1e-12
        %v792 = vrsqrt.pop %v791
        %v793 = vmul.f32 %v785, %v792
        %v794 = vlaneseq
        %v795 = vshrl.u32 %v794, 7
        %v796 = vsub.s32 4, %v795
        %v797 = vrot.slane %v369, %v796
        %v798 = vmul.f32 %v793, %v797
        %v799 = vlaneseq
        %v800 = vshrl.u32 %v799, 7
        %v801 = vsub.s32 5, %v800
        %v802 = vrot.slane %v369, %v801
        %v803 = vadd.f32 %v798, %v802
        %v804 = vld [vmem:[%s5] sm:$0xf]
        %v805 = vld [vmem:[%s5 + $0x4] sm:$0xf]
        %v806 = vld [vmem:[%s5 + $0x8] sm:$0xf]
        %v807 = vld [vmem:[%s5 + $0xc] sm:$0xf]
        %v808 = vpack.c.bf16 %v803, %v803
        %v809 = vlaneseq
        %v810 = vshrl.u32 %v809, 7
        %v811 = vsub.s32 6, %v810
        %v812 = vrot.slane %v369, %v811
        %v817 = vunpack.c.l.b16 %v804
        %v818 = vunpack.c.l.b16 %v805
        %v819 = vunpack.c.l.b16 %v806
        %v820 = vunpack.c.l.b16 %v807
        %v821 = vpack.c.b16 %v818, %v817
        %v822 = vpack.c.b16 %v820, %v819
        %v826 = vsel %vm373, %v808, 0
        %828 = vmatprep.subr.bf16.mxu0 0
        %829 = vmatpush1.bf16.msra.mxu0 0
        %830 = vmatprep.subr.bf16.mxu0 0
        %831 = vmatpush1.bf16.msra.mxu0 0
        %832 = vmatprep.subr.bf16.mxu0 0
        %833 = vmatpush1.bf16.msra.mxu0 0
        %834 = vmatprep.subr.bf16.mxu0 0
        %835 = vmatpush1.bf16.msra.mxu0 0
        %836 = vmatprep.subr.bf16.mxu0 0
        %837 = vmatpush1.bf16.msra.mxu0 0
        %838 = vmatprep.subr.bf16.mxu0 0
        %839 = vmatpush1.bf16.msra.mxu0 0
        %840 = vmatprep.subr.bf16.mxu0 0
        %841 = vmatpush1.bf16.msra.mxu0 %v822
        %842 = vmatprep.subr.bf16.mxu0 0
        %843 = vmatpush1.bf16.msra.mxu0 %v821
        %844 = vmatprep.subr.bf16.mxu0 0
        %845 = vmatpush2.bf16.msra.mxu0 0
        %846 = vmatprep.subr.bf16.mxu0 0
        %847 = vmatpush2.bf16.msra.mxu0 0
        %848 = vmatprep.subr.bf16.mxu0 0
        %849 = vmatpush2.bf16.msra.mxu0 0
        %850 = vmatprep.subr.bf16.mxu0 0
        %851 = vmatpush2.bf16.msra.mxu0 0
        %852 = vmatprep.subr.bf16.mxu0 0
        %853 = vmatpush2.bf16.msra.mxu0 0
        %854 = vmatprep.subr.bf16.mxu0 0
        %855 = vmatpush2.bf16.msra.mxu0 0
        %856 = vmatprep.subr.bf16.mxu0 0
        %857 = vmatpush2.bf16.msra.mxu0 0
        %858 = vmatprep.subr.bf16.mxu0 0
        %859 = vmatpush2.bf16.msra.mxu0 0
        %860 = vmatprep.mubr.bf16.mxu0 0
        %861 = vmatmul.mubr.bf16.gmra.mxu0 %v826
        %v862 = vpop.f32.mrf.mxu0
        %v863 = vadd.f32 %v812, %v862
        %v864 = vpop.f32.mrf.mxu0
        %v865 = vpop.f32.mrf.mxu0
        %v866 = vpop.f32.mrf.mxu0
        %867 = vdwg.mxu0
        %v868 = vmul.f32 %v863, %v863
        %v869 = vmul.f32 %v863, %v868
        %v870 = vmul.f32 %v869, 0.044715
        %v871 = vadd.f32 %v863, %v870
        %v872 = vmul.f32 %v871, 0.7978846
        %v873 = vtanh.pop %v872
        %v874 = vadd.f32 %v873, 1.0
        %v875 = vmul.f32 %v874, 0.5
        %v876 = vmul.f32 %v863, %v875
        %v877 = vld [vmem:[%s6] sm:$0xf]
        %v878 = vld [vmem:[%s6 + $0x4] sm:$0xf]
        %v879 = vld [vmem:[%s6 + $0x8] sm:$0xf]
        %v880 = vld [vmem:[%s6 + $0xc] sm:$0xf]
        %v881 = vld [vmem:[%s6 + $0x10] sm:$0xf]
        %v882 = vld [vmem:[%s6 + $0x14] sm:$0xf]
        %v883 = vld [vmem:[%s6 + $0x18] sm:$0xf]
        %v884 = vld [vmem:[%s6 + $0x1c] sm:$0xf]
        %v885 = vpack.c.bf16 %v876, %v876
        %v886 = vlaneseq
        %v887 = vshrl.u32 %v886, 7
        %v888 = vsub.s32 7, %v887
        %v889 = vrot.slane %v369, %v888
        %v898 = vunpack.c.l.b16 %v877
        %v899 = vunpack.c.l.b16 %v878
        %v900 = vunpack.c.l.b16 %v879
        %v901 = vunpack.c.l.b16 %v880
        %v902 = vunpack.c.l.b16 %v881
        %v903 = vunpack.c.l.b16 %v882
        %v904 = vunpack.c.l.b16 %v883
        %v905 = vunpack.c.l.b16 %v884
        %v906 = vpack.c.b16 %v899, %v898
        %v907 = vpack.c.b16 %v901, %v900
        %v908 = vpack.c.b16 %v903, %v902
        %v909 = vpack.c.b16 %v905, %v904
        %vm914 = vcmask 523264
        %v916 = vsel %vm914, %v885, 0
        %918 = vmatprep.subr.bf16.mxu0 0
        %919 = vmatpush1.bf16.msra.mxu0 0
        %920 = vmatprep.subr.bf16.mxu0 0
        %921 = vmatpush1.bf16.msra.mxu0 0
        %922 = vmatprep.subr.bf16.mxu0 0
        %923 = vmatpush1.bf16.msra.mxu0 0
        %924 = vmatprep.subr.bf16.mxu0 0
        %925 = vmatpush1.bf16.msra.mxu0 0
        %926 = vmatprep.subr.bf16.mxu0 0
        %927 = vmatpush1.bf16.msra.mxu0 %v909
        %928 = vmatprep.subr.bf16.mxu0 0
        %929 = vmatpush1.bf16.msra.mxu0 %v908
        %930 = vmatprep.subr.bf16.mxu0 0
        %931 = vmatpush1.bf16.msra.mxu0 %v907
        %932 = vmatprep.subr.bf16.mxu0 0
        %933 = vmatpush1.bf16.msra.mxu0 %v906
        %934 = vmatprep.subr.bf16.mxu0 0
        %935 = vmatpush2.bf16.msra.mxu0 0
        %936 = vmatprep.subr.bf16.mxu0 0
        %937 = vmatpush2.bf16.msra.mxu0 0
        %938 = vmatprep.subr.bf16.mxu0 0
        %939 = vmatpush2.bf16.msra.mxu0 0
        %940 = vmatprep.subr.bf16.mxu0 0
        %941 = vmatpush2.bf16.msra.mxu0 0
        %942 = vmatprep.subr.bf16.mxu0 0
        %943 = vmatpush2.bf16.msra.mxu0 0
        %944 = vmatprep.subr.bf16.mxu0 0
        %945 = vmatpush2.bf16.msra.mxu0 0
        %946 = vmatprep.subr.bf16.mxu0 0
        %947 = vmatpush2.bf16.msra.mxu0 0
        %948 = vmatprep.subr.bf16.mxu0 0
        %949 = vmatpush2.bf16.msra.mxu0 0
        %950 = vmatprep.mubr.bf16.mxu0 0
        %951 = vmatmul.mubr.bf16.gmra.mxu0 %v916
        %v952 = vpop.f32.mrf.mxu0
        %v953 = vadd.f32 %v889, %v952
        %v954 = vpop.f32.mrf.mxu0
        %v955 = vpop.f32.mrf.mxu0
        %v956 = vpop.f32.mrf.mxu0
        %957 = vdwg.mxu0
        %v958 = vadd.f32 %v953, %v803
        %v959 = vsel %vm373, %v958, 0.0
        %960 = vadd.xlane.f32.xlu0 %v959
        %v961 = vpop.xlane.xlu0 %960
        %v962 = vmul.f32 %v961, %v377
        %v963 = vsub.f32 %v958, %v962
        %v964 = vmul.f32 %v963, %v963
        %v965 = vsel %vm373, %v964, 0.0
        %966 = vadd.xlane.f32.xlu0 %v965
        %v967 = vpop.xlane.xlu0 %966
        %v968 = vmul.f32 %v967, %v377
        %v969 = vadd.f32 %v968, 1e-12
        %v970 = vrsqrt.pop %v969
        %v971 = vmul.f32 %v963, %v970
        %v972 = vlaneseq
        %v973 = vshrl.u32 %v972, 7
        %v974 = vsub.s32 0, %v973
        %v975 = vrot.slane %v370, %v974
        %v976 = vmul.f32 %v971, %v975
        %v977 = vlaneseq
        %v978 = vshrl.u32 %v977, 7
        %v979 = vsub.s32 1, %v978
        %v980 = vrot.slane %v370, %v979
        %v981 = vadd.f32 %v976, %v980
        %s982 = scalar_lea.vmem %s3, 16
        %v983 = vld [vmem:[%s982] sm:$0xf]
        %v984 = vld [vmem:[%s982 + $0x4] sm:$0xf]
        %v985 = vld [vmem:[%s982 + $0x8] sm:$0xf]
        %v986 = vld [vmem:[%s982 + $0xc] sm:$0xf]
        %v987 = vpack.c.bf16 %v981, %v981
        %v988 = vlaneseq
        %v989 = vshrl.u32 %v988, 7
        %v990 = vsub.s32 2, %v989
        %v991 = vrot.slane %v370, %v990
        %v996 = vunpack.c.l.b16 %v983
        %v997 = vunpack.c.l.b16 %v984
        %v998 = vunpack.c.l.b16 %v985
        %v999 = vunpack.c.l.b16 %v986
        %v1000 = vpack.c.b16 %v997, %v996
        %v1001 = vpack.c.b16 %v999, %v998
        %v1005 = vsel %vm373, %v987, 0
        %1007 = vmatprep.subr.bf16.mxu0 0
        %1008 = vmatpush1.bf16.msra.mxu0 0
        %1009 = vmatprep.subr.bf16.mxu0 0
        %1010 = vmatpush1.bf16.msra.mxu0 0
        %1011 = vmatprep.subr.bf16.mxu0 0
        %1012 = vmatpush1.bf16.msra.mxu0 0
        %1013 = vmatprep.subr.bf16.mxu0 0
        %1014 = vmatpush1.bf16.msra.mxu0 0
        %1015 = vmatprep.subr.bf16.mxu0 0
        %1016 = vmatpush1.bf16.msra.mxu0 0
        %1017 = vmatprep.subr.bf16.mxu0 0
        %1018 = vmatpush1.bf16.msra.mxu0 0
        %1019 = vmatprep.subr.bf16.mxu0 0
        %1020 = vmatpush1.bf16.msra.mxu0 %v1001
        %1021 = vmatprep.subr.bf16.mxu0 0
        %1022 = vmatpush1.bf16.msra.mxu0 %v1000
        %1023 = vmatprep.subr.bf16.mxu0 0
        %1024 = vmatpush2.bf16.msra.mxu0 0
        %1025 = vmatprep.subr.bf16.mxu0 0
        %1026 = vmatpush2.bf16.msra.mxu0 0
        %1027 = vmatprep.subr.bf16.mxu0 0
        %1028 = vmatpush2.bf16.msra.mxu0 0
        %1029 = vmatprep.subr.bf16.mxu0 0
        %1030 = vmatpush2.bf16.msra.mxu0 0
        %1031 = vmatprep.subr.bf16.mxu0 0
        %1032 = vmatpush2.bf16.msra.mxu0 0
        %1033 = vmatprep.subr.bf16.mxu0 0
        %1034 = vmatpush2.bf16.msra.mxu0 0
        %1035 = vmatprep.subr.bf16.mxu0 0
        %1036 = vmatpush2.bf16.msra.mxu0 0
        %1037 = vmatprep.subr.bf16.mxu0 0
        %1038 = vmatpush2.bf16.msra.mxu0 0
        %1039 = vmatprep.mubr.bf16.mxu0 0
        %1040 = vmatmul.mubr.bf16.gmra.mxu0 %v1005
        %v1041 = vpop.f32.mrf.mxu0
        %v1042 = vadd.f32 %v991, %v1041
        %v1043 = vpop.f32.mrf.mxu0
        %v1044 = vpop.f32.mrf.mxu0
        %v1045 = vpop.f32.mrf.mxu0
        %1046 = vdwg.mxu0
        %v1047 = vmul.f32 %v1042, %v407
        %v1048 = vpack.c.bf16 %v1047, %v1047
        %v1049 = vpack.c.bf16 %v1042, %v1042
        %1051 = vrot.lane.b32.xlu0 %v1049, 96
        %v1052 = vpop.permute.xlu0 %1051
        %v1054 = vsel %vm373, %v1048, 0
        %v1057 = vsel %vm373, %v1052, 0
        %1059 = vmatprep.subr.bf16.mxu0 0
        %1060 = vmatpush1.bf16.xpose.msra.mxu0 0
        %1061 = vmatprep.subr.bf16.mxu0 0
        %1062 = vmatpush1.bf16.xpose.msra.mxu0 0
        %1063 = vmatprep.subr.bf16.mxu0 0
        %1064 = vmatpush1.bf16.xpose.msra.mxu0 0
        %1065 = vmatprep.subr.bf16.mxu0 0
        %1066 = vmatpush1.bf16.xpose.msra.mxu0 0
        %1067 = vmatprep.subr.bf16.mxu0 0
        %1068 = vmatpush1.bf16.xpose.msra.mxu0 0
        %1069 = vmatprep.subr.bf16.mxu0 0
        %1070 = vmatpush1.bf16.xpose.msra.mxu0 0
        %1071 = vmatprep.subr.bf16.mxu0 0
        %1072 = vmatpush1.bf16.xpose.msra.mxu0 0
        %1073 = vmatprep.subr.bf16.mxu0 0
        %1074 = vmatpush1.bf16.xpose.msra.mxu0 %v1057
        %1075 = vmatprep.subr.bf16.mxu0 0
        %1076 = vmatpush2.bf16.xpose.msra.mxu0 0
        %1077 = vmatprep.subr.bf16.mxu0 0
        %1078 = vmatpush2.bf16.xpose.msra.mxu0 0
        %1079 = vmatprep.subr.bf16.mxu0 0
        %1080 = vmatpush2.bf16.xpose.msra.mxu0 0
        %1081 = vmatprep.subr.bf16.mxu0 0
        %1082 = vmatpush2.bf16.xpose.msra.mxu0 0
        %1083 = vmatprep.subr.bf16.mxu0 0
        %1084 = vmatpush2.bf16.xpose.msra.mxu0 0
        %1085 = vmatprep.subr.bf16.mxu0 0
        %1086 = vmatpush2.bf16.xpose.msra.mxu0 0
        %1087 = vmatprep.subr.bf16.mxu0 0
        %1088 = vmatpush2.bf16.xpose.msra.mxu0 0
        %1089 = vmatprep.subr.bf16.mxu0 0
        %1090 = vmatpush2.bf16.xpose.msra.mxu0 0
        %1091 = vmatprep.mubr.bf16.mxu0 0
        %1092 = vmatmul.mubr.bf16.gmra.mxu0 %v1054
        %v1093 = vpop.f32.mrf.mxu0
        %v1094 = vadd.f32 %v484, %v1093
        %v1095 = vpop.f32.mrf.mxu0
        %v1096 = vpop.f32.mrf.mxu0
        %v1097 = vpop.f32.mrf.mxu0
        %1098 = vdwg.mxu0
        %v1099 = vsel %vm535, %v1094, -inf
        %1100 = vmax.xlane.f32.xlu0 %v1099
        %v1101 = vpop.xlane.xlu0 %1100
        %v1102 = vsub.f32 %v1094, %v1101
        %v1103 = vmul.f32 %v1102, 1.442695
        %v1104 = vpow.pop %v1103
        %v1105 = vsel %vm535, %v1104, 0.0
        %1106 = vadd.xlane.f32.xlu0 %v1105
        %v1107 = vpop.xlane.xlu0 %1106
        %v1108 = vrcp.pop %v1107
        %v1109 = vmul.f32 %v1104, %v1108
        %v1110 = vpack.c.bf16 %v1109, %v1109
        %v1111 = vmul.f32 %v1042, %v550
        %v1112 = vpack.c.bf16 %v1111, %v1111
        %v1113 = vmul.f32 %v1042, %v412
        %v1114 = vpack.c.bf16 %v1113, %v1113
        %v1116 = vsel %vm373, %v1114, 0
        %1118 = vmatprep.subr.bf16.mxu0 0
        %1119 = vmatpush1.bf16.xpose.msra.mxu0 0
        %1120 = vmatprep.subr.bf16.mxu0 0
        %1121 = vmatpush1.bf16.xpose.msra.mxu0 0
        %1122 = vmatprep.subr.bf16.mxu0 0
        %1123 = vmatpush1.bf16.xpose.msra.mxu0 0
        %1124 = vmatprep.subr.bf16.mxu0 0
        %1125 = vmatpush1.bf16.xpose.msra.mxu0 0
        %1126 = vmatprep.subr.bf16.mxu0 0
        %1127 = vmatpush1.bf16.xpose.msra.mxu0 0
        %1128 = vmatprep.subr.bf16.mxu0 0
        %1129 = vmatpush1.bf16.xpose.msra.mxu0 0
        %1130 = vmatprep.subr.bf16.mxu0 0
        %1131 = vmatpush1.bf16.xpose.msra.mxu0 0
        %1132 = vmatprep.subr.bf16.mxu0 0
        %1133 = vmatpush1.bf16.xpose.msra.mxu0 %v1057
        %1134 = vmatprep.subr.bf16.mxu0 0
        %1135 = vmatpush2.bf16.xpose.msra.mxu0 0
        %1136 = vmatprep.subr.bf16.mxu0 0
        %1137 = vmatpush2.bf16.xpose.msra.mxu0 0
        %1138 = vmatprep.subr.bf16.mxu0 0
        %1139 = vmatpush2.bf16.xpose.msra.mxu0 0
        %1140 = vmatprep.subr.bf16.mxu0 0
        %1141 = vmatpush2.bf16.xpose.msra.mxu0 0
        %1142 = vmatprep.subr.bf16.mxu0 0
        %1143 = vmatpush2.bf16.xpose.msra.mxu0 0
        %1144 = vmatprep.subr.bf16.mxu0 0
        %1145 = vmatpush2.bf16.xpose.msra.mxu0 0
        %1146 = vmatprep.subr.bf16.mxu0 0
        %1147 = vmatpush2.bf16.xpose.msra.mxu0 0
        %1148 = vmatprep.subr.bf16.mxu0 0
        %1149 = vmatpush2.bf16.xpose.msra.mxu0 0
        %1150 = vmatprep.mubr.bf16.mxu0 0
        %1151 = vmatmul.mubr.bf16.gmra.mxu0 %v1116
        %v1152 = vpop.f32.mrf.mxu0
        %v1153 = vadd.f32 %v484, %v1152
        %v1154 = vpop.f32.mrf.mxu0
        %v1155 = vpop.f32.mrf.mxu0
        %v1156 = vpop.f32.mrf.mxu0
        %1157 = vdwg.mxu0
        %v1158 = vsel %vm535, %v1153, -inf
        %1159 = vmax.xlane.f32.xlu0 %v1158
        %v1160 = vpop.xlane.xlu0 %1159
        %v1161 = vsub.f32 %v1153, %v1160
        %v1162 = vmul.f32 %v1161, 1.442695
        %v1163 = vpow.pop %v1162
        %v1164 = vsel %vm535, %v1163, 0.0
        %1165 = vadd.xlane.f32.xlu0 %v1164
        %v1166 = vpop.xlane.xlu0 %1165
        %v1167 = vrcp.pop %v1166
        %v1168 = vmul.f32 %v1163, %v1167
        %v1169 = vpack.c.bf16 %v1168, %v1168
        %v1170 = vmul.f32 %v1042, %v613
        %v1171 = vpack.c.bf16 %v1170, %v1170
        %1173 = vrot.lane.b32.xlu0 %v1171, 64
        %v1174 = vpop.permute.xlu0 %1173
        %v1176 = vsel %vm535, %v1169, 0
        %v1179 = vsel %vm623, %v1174, 0
        %1181 = vmatprep.subr.bf16.mxu0 0
        %1182 = vmatpush1.bf16.msra.mxu0 0
        %1183 = vmatprep.subr.bf16.mxu0 0
        %1184 = vmatpush1.bf16.msra.mxu0 0
        %1185 = vmatprep.subr.bf16.mxu0 0
        %1186 = vmatpush1.bf16.msra.mxu0 0
        %1187 = vmatprep.subr.bf16.mxu0 0
        %1188 = vmatpush1.bf16.msra.mxu0 0
        %1189 = vmatprep.subr.bf16.mxu0 0
        %1190 = vmatpush1.bf16.msra.mxu0 0
        %1191 = vmatprep.subr.bf16.mxu0 0
        %1192 = vmatpush1.bf16.msra.mxu0 0
        %1193 = vmatprep.subr.bf16.mxu0 0
        %1194 = vmatpush1.bf16.msra.mxu0 0
        %1195 = vmatprep.subr.bf16.mxu0 0
        %1196 = vmatpush1.bf16.msra.mxu0 %v1179
        %1197 = vmatprep.subr.bf16.mxu0 0
        %1198 = vmatpush2.bf16.msra.mxu0 0
        %1199 = vmatprep.subr.bf16.mxu0 0
        %1200 = vmatpush2.bf16.msra.mxu0 0
        %1201 = vmatprep.subr.bf16.mxu0 0
        %1202 = vmatpush2.bf16.msra.mxu0 0
        %1203 = vmatprep.subr.bf16.mxu0 0
        %1204 = vmatpush2.bf16.msra.mxu0 0
        %1205 = vmatprep.subr.bf16.mxu0 0
        %1206 = vmatpush2.bf16.msra.mxu0 0
        %1207 = vmatprep.subr.bf16.mxu0 0
        %1208 = vmatpush2.bf16.msra.mxu0 0
        %1209 = vmatprep.subr.bf16.mxu0 0
        %1210 = vmatpush2.bf16.msra.mxu0 0
        %1211 = vmatprep.subr.bf16.mxu0 0
        %1212 = vmatpush2.bf16.msra.mxu0 0
        %1213 = vmatprep.mubr.bf16.mxu0 0
        %1214 = vmatmul.mubr.bf16.gmra.mxu0 %v1176
        %v1215 = vpop.f32.mrf.mxu0
        %v1216 = vadd.f32 0.0, %v1215
        %v1217 = vpop.f32.mrf.mxu0
        %v1218 = vpop.f32.mrf.mxu0
        %v1219 = vpop.f32.mrf.mxu0
        %1220 = vdwg.mxu0
        %1222 = vrot.lane.b32.xlu0 %v1112, 64
        %v1223 = vpop.permute.xlu0 %1222
        %v1225 = vsel %vm535, %v1110, 0
        %v1228 = vsel %vm623, %v1223, 0
        %1230 = vmatprep.subr.bf16.mxu0 0
        %1231 = vmatpush1.bf16.msra.mxu0 0
        %1232 = vmatprep.subr.bf16.mxu0 0
        %1233 = vmatpush1.bf16.msra.mxu0 0
        %1234 = vmatprep.subr.bf16.mxu0 0
        %1235 = vmatpush1.bf16.msra.mxu0 0
        %1236 = vmatprep.subr.bf16.mxu0 0
        %1237 = vmatpush1.bf16.msra.mxu0 0
        %1238 = vmatprep.subr.bf16.mxu0 0
        %1239 = vmatpush1.bf16.msra.mxu0 0
        %1240 = vmatprep.subr.bf16.mxu0 0
        %1241 = vmatpush1.bf16.msra.mxu0 0
        %1242 = vmatprep.subr.bf16.mxu0 0
        %1243 = vmatpush1.bf16.msra.mxu0 0
        %1244 = vmatprep.subr.bf16.mxu0 0
        %1245 = vmatpush1.bf16.msra.mxu0 %v1228
        %1246 = vmatprep.subr.bf16.mxu0 0
        %1247 = vmatpush2.bf16.msra.mxu0 0
        %1248 = vmatprep.subr.bf16.mxu0 0
        %1249 = vmatpush2.bf16.msra.mxu0 0
        %1250 = vmatprep.subr.bf16.mxu0 0
        %1251 = vmatpush2.bf16.msra.mxu0 0
        %1252 = vmatprep.subr.bf16.mxu0 0
        %1253 = vmatpush2.bf16.msra.mxu0 0
        %1254 = vmatprep.subr.bf16.mxu0 0
        %1255 = vmatpush2.bf16.msra.mxu0 0
        %1256 = vmatprep.subr.bf16.mxu0 0
        %1257 = vmatpush2.bf16.msra.mxu0 0
        %1258 = vmatprep.subr.bf16.mxu0 0
        %1259 = vmatpush2.bf16.msra.mxu0 0
        %1260 = vmatprep.subr.bf16.mxu0 0
        %1261 = vmatpush2.bf16.msra.mxu0 0
        %1262 = vmatprep.mubr.bf16.mxu0 0
        %1263 = vmatmul.mubr.bf16.gmra.mxu0 %v1225
        %v1264 = vpop.f32.mrf.mxu0
        %v1265 = vadd.f32 %v1216, %v1264
        %v1266 = vpop.f32.mrf.mxu0
        %v1267 = vpop.f32.mrf.mxu0
        %v1268 = vpop.f32.mrf.mxu0
        %1269 = vdwg.mxu0
        %s1270 = scalar_lea.vmem %s4, 16
        %v1271 = vld [vmem:[%s1270] sm:$0xf]
        %v1272 = vld [vmem:[%s1270 + $0x4] sm:$0xf]
        %v1273 = vld [vmem:[%s1270 + $0x8] sm:$0xf]
        %v1274 = vld [vmem:[%s1270 + $0xc] sm:$0xf]
        %v1275 = vpack.c.bf16 %v1265, %v1265
        %v1276 = vlaneseq
        %v1277 = vshrl.u32 %v1276, 7
        %v1278 = vsub.s32 3, %v1277
        %v1279 = vrot.slane %v370, %v1278
        %v1284 = vunpack.c.l.b16 %v1271
        %v1285 = vunpack.c.l.b16 %v1272
        %v1286 = vunpack.c.l.b16 %v1273
        %v1287 = vunpack.c.l.b16 %v1274
        %v1288 = vpack.c.b16 %v1285, %v1284
        %v1289 = vpack.c.b16 %v1287, %v1286
        %v1293 = vsel %vm373, %v1275, 0
        %1295 = vmatprep.subr.bf16.mxu0 0
        %1296 = vmatpush1.bf16.msra.mxu0 0
        %1297 = vmatprep.subr.bf16.mxu0 0
        %1298 = vmatpush1.bf16.msra.mxu0 0
        %1299 = vmatprep.subr.bf16.mxu0 0
        %1300 = vmatpush1.bf16.msra.mxu0 0
        %1301 = vmatprep.subr.bf16.mxu0 0
        %1302 = vmatpush1.bf16.msra.mxu0 0
        %1303 = vmatprep.subr.bf16.mxu0 0
        %1304 = vmatpush1.bf16.msra.mxu0 0
        %1305 = vmatprep.subr.bf16.mxu0 0
        %1306 = vmatpush1.bf16.msra.mxu0 0
        %1307 = vmatprep.subr.bf16.mxu0 0
        %1308 = vmatpush1.bf16.msra.mxu0 %v1289
        %1309 = vmatprep.subr.bf16.mxu0 0
        %1310 = vmatpush1.bf16.msra.mxu0 %v1288
        %1311 = vmatprep.subr.bf16.mxu0 0
        %1312 = vmatpush2.bf16.msra.mxu0 0
        %1313 = vmatprep.subr.bf16.mxu0 0
        %1314 = vmatpush2.bf16.msra.mxu0 0
        %1315 = vmatprep.subr.bf16.mxu0 0
        %1316 = vmatpush2.bf16.msra.mxu0 0
        %1317 = vmatprep.subr.bf16.mxu0 0
        %1318 = vmatpush2.bf16.msra.mxu0 0
        %1319 = vmatprep.subr.bf16.mxu0 0
        %1320 = vmatpush2.bf16.msra.mxu0 0
        %1321 = vmatprep.subr.bf16.mxu0 0
        %1322 = vmatpush2.bf16.msra.mxu0 0
        %1323 = vmatprep.subr.bf16.mxu0 0
        %1324 = vmatpush2.bf16.msra.mxu0 0
        %1325 = vmatprep.subr.bf16.mxu0 0
        %1326 = vmatpush2.bf16.msra.mxu0 0
        %1327 = vmatprep.mubr.bf16.mxu0 0
        %1328 = vmatmul.mubr.bf16.gmra.mxu0 %v1293
        %v1329 = vpop.f32.mrf.mxu0
        %v1330 = vadd.f32 %v1279, %v1329
        %v1331 = vpop.f32.mrf.mxu0
        %v1332 = vpop.f32.mrf.mxu0
        %v1333 = vpop.f32.mrf.mxu0
        %1334 = vdwg.mxu0
        %v1335 = vadd.f32 %v1330, %v981
        %v1336 = vsel %vm373, %v1335, 0.0
        %1337 = vadd.xlane.f32.xlu0 %v1336
        %v1338 = vpop.xlane.xlu0 %1337
        %v1339 = vmul.f32 %v1338, %v377
        %v1340 = vsub.f32 %v1335, %v1339
        %v1341 = vmul.f32 %v1340, %v1340
        %v1342 = vsel %vm373, %v1341, 0.0
        %1343 = vadd.xlane.f32.xlu0 %v1342
        %v1344 = vpop.xlane.xlu0 %1343
        %v1345 = vmul.f32 %v1344, %v377
        %v1346 = vadd.f32 %v1345, 1e-12
        %v1347 = vrsqrt.pop %v1346
        %v1348 = vmul.f32 %v1340, %v1347
        %v1349 = vlaneseq
        %v1350 = vshrl.u32 %v1349, 7
        %v1351 = vsub.s32 4, %v1350
        %v1352 = vrot.slane %v370, %v1351
        %v1353 = vmul.f32 %v1348, %v1352
        %v1354 = vlaneseq
        %v1355 = vshrl.u32 %v1354, 7
        %v1356 = vsub.s32 5, %v1355
        %v1357 = vrot.slane %v370, %v1356
        %v1358 = vadd.f32 %v1353, %v1357
        %s1359 = scalar_lea.vmem %s5, 16
        %v1360 = vld [vmem:[%s1359] sm:$0xf]
        %v1361 = vld [vmem:[%s1359 + $0x4] sm:$0xf]
        %v1362 = vld [vmem:[%s1359 + $0x8] sm:$0xf]
        %v1363 = vld [vmem:[%s1359 + $0xc] sm:$0xf]
        %v1364 = vpack.c.bf16 %v1358, %v1358
        %v1365 = vlaneseq
        %v1366 = vshrl.u32 %v1365, 7
        %v1367 = vsub.s32 6, %v1366
        %v1368 = vrot.slane %v370, %v1367
        %v1373 = vunpack.c.l.b16 %v1360
        %v1374 = vunpack.c.l.b16 %v1361
        %v1375 = vunpack.c.l.b16 %v1362
        %v1376 = vunpack.c.l.b16 %v1363
        %v1377 = vpack.c.b16 %v1374, %v1373
        %v1378 = vpack.c.b16 %v1376, %v1375
        %v1382 = vsel %vm373, %v1364, 0
        %1384 = vmatprep.subr.bf16.mxu0 0
        %1385 = vmatpush1.bf16.msra.mxu0 0
        %1386 = vmatprep.subr.bf16.mxu0 0
        %1387 = vmatpush1.bf16.msra.mxu0 0
        %1388 = vmatprep.subr.bf16.mxu0 0
        %1389 = vmatpush1.bf16.msra.mxu0 0
        %1390 = vmatprep.subr.bf16.mxu0 0
        %1391 = vmatpush1.bf16.msra.mxu0 0
        %1392 = vmatprep.subr.bf16.mxu0 0
        %1393 = vmatpush1.bf16.msra.mxu0 0
        %1394 = vmatprep.subr.bf16.mxu0 0
        %1395 = vmatpush1.bf16.msra.mxu0 0
        %1396 = vmatprep.subr.bf16.mxu0 0
        %1397 = vmatpush1.bf16.msra.mxu0 %v1378
        %1398 = vmatprep.subr.bf16.mxu0 0
        %1399 = vmatpush1.bf16.msra.mxu0 %v1377
        %1400 = vmatprep.subr.bf16.mxu0 0
        %1401 = vmatpush2.bf16.msra.mxu0 0
        %1402 = vmatprep.subr.bf16.mxu0 0
        %1403 = vmatpush2.bf16.msra.mxu0 0
        %1404 = vmatprep.subr.bf16.mxu0 0
        %1405 = vmatpush2.bf16.msra.mxu0 0
        %1406 = vmatprep.subr.bf16.mxu0 0
        %1407 = vmatpush2.bf16.msra.mxu0 0
        %1408 = vmatprep.subr.bf16.mxu0 0
        %1409 = vmatpush2.bf16.msra.mxu0 0
        %1410 = vmatprep.subr.bf16.mxu0 0
        %1411 = vmatpush2.bf16.msra.mxu0 0
        %1412 = vmatprep.subr.bf16.mxu0 0
        %1413 = vmatpush2.bf16.msra.mxu0 0
        %1414 = vmatprep.subr.bf16.mxu0 0
        %1415 = vmatpush2.bf16.msra.mxu0 0
        %1416 = vmatprep.mubr.bf16.mxu0 0
        %1417 = vmatmul.mubr.bf16.gmra.mxu0 %v1382
        %v1418 = vpop.f32.mrf.mxu0
        %v1419 = vadd.f32 %v1368, %v1418
        %v1420 = vpop.f32.mrf.mxu0
        %v1421 = vpop.f32.mrf.mxu0
        %v1422 = vpop.f32.mrf.mxu0
        %1423 = vdwg.mxu0
        %v1424 = vmul.f32 %v1419, %v1419
        %v1425 = vmul.f32 %v1419, %v1424
        %v1426 = vmul.f32 %v1425, 0.044715
        %v1427 = vadd.f32 %v1419, %v1426
        %v1428 = vmul.f32 %v1427, 0.7978846
        %v1429 = vtanh.pop %v1428
        %v1430 = vadd.f32 %v1429, 1.0
        %v1431 = vmul.f32 %v1430, 0.5
        %v1432 = vmul.f32 %v1419, %v1431
        %s1433 = scalar_lea.vmem %s6, 32
        %v1434 = vld [vmem:[%s1433] sm:$0xf]
        %v1435 = vld [vmem:[%s1433 + $0x4] sm:$0xf]
        %v1436 = vld [vmem:[%s1433 + $0x8] sm:$0xf]
        %v1437 = vld [vmem:[%s1433 + $0xc] sm:$0xf]
        %v1438 = vld [vmem:[%s1433 + $0x10] sm:$0xf]
        %v1439 = vld [vmem:[%s1433 + $0x14] sm:$0xf]
        %v1440 = vld [vmem:[%s1433 + $0x18] sm:$0xf]
        %v1441 = vld [vmem:[%s1433 + $0x1c] sm:$0xf]
        %v1442 = vpack.c.bf16 %v1432, %v1432
        %v1443 = vlaneseq
        %v1444 = vshrl.u32 %v1443, 7
        %v1445 = vsub.s32 7, %v1444
        %v1446 = vrot.slane %v370, %v1445
        %v1455 = vunpack.c.l.b16 %v1434
        %v1456 = vunpack.c.l.b16 %v1435
        %v1457 = vunpack.c.l.b16 %v1436
        %v1458 = vunpack.c.l.b16 %v1437
        %v1459 = vunpack.c.l.b16 %v1438
        %v1460 = vunpack.c.l.b16 %v1439
        %v1461 = vunpack.c.l.b16 %v1440
        %v1462 = vunpack.c.l.b16 %v1441
        %v1463 = vpack.c.b16 %v1456, %v1455
        %v1464 = vpack.c.b16 %v1458, %v1457
        %v1465 = vpack.c.b16 %v1460, %v1459
        %v1466 = vpack.c.b16 %v1462, %v1461
        %v1472 = vsel %vm914, %v1442, 0
        %1474 = vmatprep.subr.bf16.mxu0 0
        %1475 = vmatpush1.bf16.msra.mxu0 0
        %1476 = vmatprep.subr.bf16.mxu0 0
        %1477 = vmatpush1.bf16.msra.mxu0 0
        %1478 = vmatprep.subr.bf16.mxu0 0
        %1479 = vmatpush1.bf16.msra.mxu0 0
        %1480 = vmatprep.subr.bf16.mxu0 0
        %1481 = vmatpush1.bf16.msra.mxu0 0
        %1482 = vmatprep.subr.bf16.mxu0 0
        %1483 = vmatpush1.bf16.msra.mxu0 %v1466
        %1484 = vmatprep.subr.bf16.mxu0 0
        %1485 = vmatpush1.bf16.msra.mxu0 %v1465
        %1486 = vmatprep.subr.bf16.mxu0 0
        %1487 = vmatpush1.bf16.msra.mxu0 %v1464
        %1488 = vmatprep.subr.bf16.mxu0 0
        %1489 = vmatpush1.bf16.msra.mxu0 %v1463
        %1490 = vmatprep.subr.bf16.mxu0 0
        %1491 = vmatpush2.bf16.msra.mxu0 0
        %1492 = vmatprep.subr.bf16.mxu0 0
        %1493 = vmatpush2.bf16.msra.mxu0 0
        %1494 = vmatprep.subr.bf16.mxu0 0
        %1495 = vmatpush2.bf16.msra.mxu0 0
        %1496 = vmatprep.subr.bf16.mxu0 0
        %1497 = vmatpush2.bf16.msra.mxu0 0
        %1498 = vmatprep.subr.bf16.mxu0 0
        %1499 = vmatpush2.bf16.msra.mxu0 0
        %1500 = vmatprep.subr.bf16.mxu0 0
        %1501 = vmatpush2.bf16.msra.mxu0 0
        %1502 = vmatprep.subr.bf16.mxu0 0
        %1503 = vmatpush2.bf16.msra.mxu0 0
        %1504 = vmatprep.subr.bf16.mxu0 0
        %1505 = vmatpush2.bf16.msra.mxu0 0
        %1506 = vmatprep.mubr.bf16.mxu0 0
        %1507 = vmatmul.mubr.bf16.gmra.mxu0 %v1472
        %v1508 = vpop.f32.mrf.mxu0
        %v1509 = vadd.f32 %v1446, %v1508
        %v1510 = vpop.f32.mrf.mxu0
        %v1511 = vpop.f32.mrf.mxu0
        %v1512 = vpop.f32.mrf.mxu0
        %1513 = vdwg.mxu0
        %v1514 = vadd.f32 %v1509, %v1358
        %v1515 = vsel %vm373, %v1514, 0.0
        %1516 = vadd.xlane.f32.xlu0 %v1515
        %v1517 = vpop.xlane.xlu0 %1516
        %v1518 = vmul.f32 %v1517, %v377
        %v1519 = vsub.f32 %v1514, %v1518
        %v1520 = vmul.f32 %v1519, %v1519
        %v1521 = vsel %vm373, %v1520, 0.0
        %1522 = vadd.xlane.f32.xlu0 %v1521
        %v1523 = vpop.xlane.xlu0 %1522
        %v1524 = vmul.f32 %v1523, %v377
        %v1525 = vadd.f32 %v1524, 1e-12
        %v1526 = vrsqrt.pop %v1525
        %v1527 = vmul.f32 %v1519, %v1526
        %v1528 = vlaneseq
        %v1529 = vshrl.u32 %v1528, 7
        %v1530 = vsub.s32 0, %v1529
        %v1531 = vrot.slane %v371, %v1530
        %v1532 = vmul.f32 %v1527, %v1531
        %v1533 = vlaneseq
        %v1534 = vshrl.u32 %v1533, 7
        %v1535 = vsub.s32 1, %v1534
        %v1536 = vrot.slane %v371, %v1535
        %v1537 = vadd.f32 %v1532, %v1536
        %v1539 = vsel %vm535, 0.125, 0
        %1541 = vmatprep.subr.mxu0 0.0
        %1542 = vmatpush1.msra.mxu0 0.0
        %1543 = vmatprep.subr.mxu0 0.0
        %1544 = vmatpush1.msra.mxu0 0.0
        %1545 = vmatprep.subr.mxu0 0.0
        %1546 = vmatpush1.msra.mxu0 0.0
        %1547 = vmatprep.subr.mxu0 0.0
        %1548 = vmatpush1.msra.mxu0 0.0
        %1549 = vmatprep.subr.mxu0 0.0
        %1550 = vmatpush1.msra.mxu0 0.0
        %1551 = vmatprep.subr.mxu0 0.0
        %1552 = vmatpush1.msra.mxu0 0.0
        %1553 = vmatprep.subr.mxu0 0.0
        %1554 = vmatpush1.msra.mxu0 0.0
        %1555 = vmatprep.subr.mxu0 0.0
        %1556 = vmatpush1.msra.mxu0 0.0
        %1557 = vmatprep.subr.mxu0 0.0
        %1558 = vmatpush1.msra.mxu0 0.0
        %1559 = vmatprep.subr.mxu0 0.0
        %1560 = vmatpush1.msra.mxu0 0.0
        %1561 = vmatprep.subr.mxu0 0.0
        %1562 = vmatpush1.msra.mxu0 0.0
        %1563 = vmatprep.subr.mxu0 0.0
        %1564 = vmatpush1.msra.mxu0 0.0
        %1565 = vmatprep.subr.mxu0 0.0
        %1566 = vmatpush1.msra.mxu0 0.0
        %1567 = vmatprep.subr.mxu0 0.0
        %1568 = vmatpush1.msra.mxu0 0.0
        %1569 = vmatprep.subr.mxu0 0.0
        %1570 = vmatpush1.msra.mxu0 0.0
        %1571 = vmatprep.subr.mxu0 0.0
        %1572 = vmatpush1.msra.mxu0 %v1537
        %1573 = vmatprep.subr.mxu0 0.0
        %1574 = vmatpush2.msra.mxu0 0.0
        %1575 = vmatprep.subr.mxu0 0.0
        %1576 = vmatpush2.msra.mxu0 0.0
        %1577 = vmatprep.subr.mxu0 0.0
        %1578 = vmatpush2.msra.mxu0 0.0
        %1579 = vmatprep.subr.mxu0 0.0
        %1580 = vmatpush2.msra.mxu0 0.0
        %1581 = vmatprep.subr.mxu0 0.0
        %1582 = vmatpush2.msra.mxu0 0.0
        %1583 = vmatprep.subr.mxu0 0.0
        %1584 = vmatpush2.msra.mxu0 0.0
        %1585 = vmatprep.subr.mxu0 0.0
        %1586 = vmatpush2.msra.mxu0 0.0
        %1587 = vmatprep.subr.mxu0 0.0
        %1588 = vmatpush2.msra.mxu0 0.0
        %1589 = vmatprep.subr.mxu0 0.0
        %1590 = vmatpush2.msra.mxu0 0.0
        %1591 = vmatprep.subr.mxu0 0.0
        %1592 = vmatpush2.msra.mxu0 0.0
        %1593 = vmatprep.subr.mxu0 0.0
        %1594 = vmatpush2.msra.mxu0 0.0
        %1595 = vmatprep.subr.mxu0 0.0
        %1596 = vmatpush2.msra.mxu0 0.0
        %1597 = vmatprep.subr.mxu0 0.0
        %1598 = vmatpush2.msra.mxu0 0.0
        %1599 = vmatprep.subr.mxu0 0.0
        %1600 = vmatpush2.msra.mxu0 0.0
        %1601 = vmatprep.subr.mxu0 0.0
        %1602 = vmatpush2.msra.mxu0 0.0
        %1603 = vmatprep.subr.mxu0 0.0
        %1604 = vmatpush2.msra.mxu0 0.0
        %1605 = vmatprep.mubr.f32.mxu0 0.0
        %1606 = vmatmul.mubr.f32.gmra.mxu0 %v1539
        %v1607 = vpop.f32.mrf.mxu0
        %v1608 = vadd.f32 0.0, %v1607
        %v1609 = vpop.f32.mrf.mxu0
        %1610 = vdwg.mxu0
        %v1611 = vld [vmem:[%s7] sm:$0xf]
        %v1612 = vld [vmem:[%s7 + $0x4] sm:$0xf]
        %v1613 = vld [vmem:[%s7 + $0x8] sm:$0xf]
        %v1614 = vld [vmem:[%s7 + $0xc] sm:$0xf]
        %v1615 = vld [vmem:[%s7 + $0x10] sm:$0x1]
        %v1616 = vpack.c.bf16 %v1608, %v1608
        %v1621 = vunpack.c.l.b16 %v1611
        %v1622 = vunpack.c.l.b16 %v1612
        %v1623 = vunpack.c.l.b16 %v1613
        %v1624 = vunpack.c.l.b16 %v1614
        %v1625 = vpack.c.b16 %v1622, %v1621
        %v1626 = vpack.c.b16 %v1624, %v1623
        %v1630 = vrot.slane %v371, 2
        %v1633 = vsel %vm373, %v1616, 0
        %1635 = vmatprep.subr.bf16.mxu0 0
        %1636 = vmatpush1.bf16.msra.mxu0 0
        %1637 = vmatprep.subr.bf16.mxu0 0
        %1638 = vmatpush1.bf16.msra.mxu0 0
        %1639 = vmatprep.subr.bf16.mxu0 0
        %1640 = vmatpush1.bf16.msra.mxu0 0
        %1641 = vmatprep.subr.bf16.mxu0 0
        %1642 = vmatpush1.bf16.msra.mxu0 0
        %1643 = vmatprep.subr.bf16.mxu0 0
        %1644 = vmatpush1.bf16.msra.mxu0 0
        %1645 = vmatprep.subr.bf16.mxu0 0
        %1646 = vmatpush1.bf16.msra.mxu0 0
        %1647 = vmatprep.subr.bf16.mxu0 0
        %1648 = vmatpush1.bf16.msra.mxu0 %v1626
        %1649 = vmatprep.subr.bf16.mxu0 0
        %1650 = vmatpush1.bf16.msra.mxu0 %v1625
        %1651 = vmatprep.subr.bf16.mxu0 0
        %1652 = vmatpush2.bf16.msra.mxu0 0
        %1653 = vmatprep.subr.bf16.mxu0 0
        %1654 = vmatpush2.bf16.msra.mxu0 0
        %1655 = vmatprep.subr.bf16.mxu0 0
        %1656 = vmatpush2.bf16.msra.mxu0 0
        %1657 = vmatprep.subr.bf16.mxu0 0
        %1658 = vmatpush2.bf16.msra.mxu0 0
        %1659 = vmatprep.subr.bf16.mxu0 0
        %1660 = vmatpush2.bf16.msra.mxu0 0
        %1661 = vmatprep.subr.bf16.mxu0 0
        %1662 = vmatpush2.bf16.msra.mxu0 0
        %1663 = vmatprep.subr.bf16.mxu0 0
        %1664 = vmatpush2.bf16.msra.mxu0 0
        %1665 = vmatprep.subr.bf16.mxu0 0
        %1666 = vmatpush2.bf16.msra.mxu0 0
        %1667 = vmatprep.mubr.bf16.mxu0 0
        %1668 = vmatmul.mubr.bf16.gmra.mxu0 %v1633
        %v1669 = vpop.f32.mrf.mxu0
        %v1670 = vadd.f32 %v1630, %v1669
        %v1671 = vpop.f32.mrf.mxu0
        %v1672 = vpop.f32.mrf.mxu0
        %v1673 = vpop.f32.mrf.mxu0
        %1674 = vdwg.mxu0
        %v1675 = vmax.f32 %v1670, 0.0
        %v1676 = vunpack.c.l.bf16 %v1615
        %v1677 = vmul.f32 %v1675, %v1676
        %vm1678 = vcmask 122880
        %v1679 = vsel %vm1678, %v1677, 0.0
        %1680 = vadd.xlane.f32.xlu0 %v1679
        %v1681 = vpop.xlane.xlu0 %1680
        %v1682 = vrot.slane %v371, 3
        %v1684 = vadd.f32 %v1681, %v1682
        %1686 = vrot.lane.b32.xlu0 %v1684, 32
        %v1687 = vpop.permute.xlu0 %1686
        %v1689 = vsel %vm373, %v1608, %v1687
        %vm1690 = vcmask 269312
        %v1691 = vsel %vm1690, %v1689, 0.0
        %1692 = vst [vmem:[%s367] sm:$0x1] %v1691
        %s1693 = sand.u32 %s214, 1
        %s1694 = scalar_lea.sflag [#allocation4], %s1693
        %s1695 = sand.u32 %s214, 1
        %s1696 = scalar_lea.vmem [#allocation8], %s1695
        // Predicated region
        $region65: #{tpu_custom_call.1} parent=51 // pred_check
          %p1697 = pneg %p224
        $region66: #{tpu_custom_call.1} parent=51 // pred_check_branch
          %1699 = sbr.rel (%p1697) target = $region68
        $region67: #{tpu_custom_call.1} parent=51 // pred_region
          %s1701 = ssub.s32 16, 16
          %1702 = vsyncadd %s1694, %s1701
          %s1703 = smul.addr %s28, 16
          %s1704 = scalar_lea.hbm %s8, %s1703
          %s1706 = sshll.u32 %s1696, 4
          %s1707 = int_to_ptr.vmem [resolvable:$true] %s1706
          %1709 = dma.vmem_to_hbm [thread:$0]  %s1707, 16, %s1704, %s1694
        $region68: #{tpu_custom_call.1} parent=51 // pred_fallthru
          _
      $region52: #{tpu_custom_call.1} parent=5 // pred_fallthru
        _
      %p1710 = scmp.le.s32.totalorder 2, %s23
      // Predicated region
      $region69: #{tpu_custom_call.1} parent=5 // pred_check
        %p1711 = pneg %p1710
      $region70: #{tpu_custom_call.1} parent=5 // pred_check_branch
        %1713 = sbr.rel (%p1711) target = $region72
      $region71: #{tpu_custom_call.1} parent=5 // pred_region
        %s1714 = ssub.s32 %s23, 2
        // Predicated region
        $region73: #{tpu_custom_call.1} parent=71 // pred_check
          %p1715 = pneg %p230
        $region74: #{tpu_custom_call.1} parent=71 // pred_check_branch
          %1717 = sbr.rel (%p1715) target = $region76
        $region75: #{tpu_custom_call.1} parent=71 // pred_region
          %s1718 = sand.u32 %s215, 1
          %s1719 = scalar_lea.sflag [#allocation4], %s1718
          %s1720 = sand.u32 %s215, 1
          %s1721 = scalar_lea.vmem [#allocation8], %s1720
          %1722 = dma.done %s1719, 16
        $region76: #{tpu_custom_call.1} parent=71 // pred_fallthru
          _
      $region72: #{tpu_custom_call.1} parent=5 // pred_fallthru
        _
    $region6: #{tpu_custom_call.1} parent=1 // loop_footer
      %s27 = sadd.s32 1, %s23
    $region7: #{tpu_custom_call.1} parent=1 // loop_footer_branch
      %22 = sbr.rel target = $region3
    $region8: #{tpu_custom_call.1} parent=1 // loop_exit
      _
    %1723 = vsyncpa [#allocation3], 1
    %s1724 = scalar_lea.sflag [#allocation3], 1
    %1725 = vsyncpa %s1724, 1
    %1726 = vsyncpa [#allocation6], 1
    %s1727 = scalar_lea.sflag [#allocation6], 1
    %1728 = vsyncpa %s1727, 1
    %1729 = vsyncpa [#allocation4], 1
    %s1730 = scalar_lea.sflag [#allocation4], 1
    %1731 = vsyncpa %s1730, 1

</llo_original>
